<compile_context>
chip_gen: v7x
topology: tpu7x:2x2x1
jax: 0.10.0
libtpu: 0.0.40
codegen_flags: <defaults>
</compile_context>

<pallas_src>
import jax
import jax.numpy as jnp
from jax.experimental import pallas as pl
from jax.experimental.pallas import tpu as pltpu


# ----------------------------------------------------------------------------------
# Kernel
# ----------------------------------------------------------------------------------
def make_decoder_kernel(num_layers):
    """Build the per-(batch-tile, decode-step) kernel body for `num_layers` GRU layers."""

    def kernel(*refs):
        # ---- unpack refs: inputs, outputs, scratch (fixed order, see wrapper) ----
        (x_ref, enc_ref, vl_ref, wq_ref, wk_ref, wv_ref, h0_ref) = refs[:7]
        idx = 7
        wi0c_ref, wi0x_ref, wh0_ref, bi0_ref, bh0_ref = refs[idx:idx + 5]
        idx += 5
        deep = []
        for _ in range(num_layers - 1):
            deep.append(refs[idx:idx + 4])            # (wi, wh, bi, bh)
            idx += 4
        wd_ref, bd_ref = refs[idx:idx + 2]
        idx += 2
        logits_ref, attn_ref, hfin_ref = refs[idx:idx + 3]
        idx += 3
        keys_s, h_s = refs[idx:idx + 2]

        Bt, T_enc, H = enc_ref.shape
        t = pl.program_id(1)

        def sigmoid(v):                               # keep it on exp (EUP) + basic VPU ops
            return 1.0 / (1.0 + jnp.exp(-v))

        # ---- once per batch tile: hoist W_k(enc_outputs) out of the decode loop and
        #      load the initial hidden state. batch*seq fused into the matmul M dim. ----
        @pl.when(t == 0)
        def _init():
            enc2d = enc_ref[...].reshape(Bt * T_enc, H)
            keys = jnp.dot(enc2d, wk_ref[...], preferred_element_type=jnp.float32)
            keys_s[...] = keys.reshape(Bt, T_enc, H)
            h_s[...] = h0_ref[...]

        x = x_ref[0]                                  # (Bt, E) current-step embeddings

        # ------------- additive attention (query = top-layer hidden state) -------------
        h_top = h_s[num_layers - 1]                                            # (Bt, H)
        q = jnp.dot(h_top, wq_ref[...], preferred_element_type=jnp.float32)    # (Bt, H)
        feat = jnp.tanh(keys_s[...] + q[:, None, :])                           # (Bt, T_enc, H)
        scores = jnp.sum(feat * wv_ref[...][None, :, :], axis=-1)              # (Bt, T_enc)

        # masked_softmax semantics: fill invalid key positions with -1e6
        col = jax.lax.broadcasted_iota(jnp.int32, (Bt, T_enc), 1)
        scores = jnp.where(col < vl_ref[...], scores, jnp.float32(-1.0e6))

        m = jnp.max(scores, axis=-1, keepdims=True)
        e = jnp.exp(scores - m)
        w = e / jnp.sum(e, axis=-1, keepdims=True)                             # (Bt, T_enc)
        attn_ref[0] = w
        context = jnp.sum(w[:, :, None] * enc_ref[...], axis=1)                # (Bt, H)

        # ---------------------------- stacked GRU (one step) ----------------------------
        def gru_update(gi, gh, h_prev):               # PyTorch gate order [r, z, n]
            r = sigmoid(gi[:, :H] + gh[:, :H])
            z = sigmoid(gi[:, H:2 * H] + gh[:, H:2 * H])
            n = jnp.tanh(gi[:, 2 * H:] + r * gh[:, 2 * H:])
            return (1.0 - z) * n + z * h_prev

        # layer 0: input = cat(context, x); weights pre-split -> no lane-axis concat
        h_prev = h_s[0]
        gi = (jnp.dot(context, wi0c_ref[...], preferred_element_type=jnp.float32)
              + jnp.dot(x, wi0x_ref[...], preferred_element_type=jnp.float32)
              + bi0_ref[...])
        gh = jnp.dot(h_prev, wh0_ref[...], preferred_element_type=jnp.float32) + bh0_ref[...]
        h_new = gru_update(gi, gh, h_prev)
        h_s[0] = h_new
        layer_in = h_new

        for l in range(1, num_layers):                # statically unrolled (num_layers small)
            wi_ref, wh_ref, bi_ref, bh_ref = deep[l - 1]
            h_prev = h_s[l]
            gi = jnp.dot(layer_in, wi_ref[...], preferred_element_type=jnp.float32) + bi_ref[...]
            gh = jnp.dot(h_prev, wh_ref[...], preferred_element_type=jnp.float32) + bh_ref[...]
            h_new = gru_update(gi, gh, h_prev)
            h_s[l] = h_new
            layer_in = h_new

        # ------------------------------- vocab projection -------------------------------
        logits_ref[0] = (jnp.dot(layer_in, wd_ref[...], preferred_element_type=jnp.float32)
                         + bd_ref[...])

        # expose the carried hidden state as an output (block index constant over t,
        # so it stays resident and the final value is written back once per tile).
        hfin_ref[...] = h_s[...]

    return kernel


# ----------------------------------------------------------------------------------
# Wrapper
# ----------------------------------------------------------------------------------
def seq2seq_attention_decoder(X_ids, state, params, num_layers, b_tile=None):
    enc_outputs, hidden_state, enc_valid_lens = state
    B, T_dec = X_ids.shape
    _, T_enc, H = enc_outputs.shape
    E = params['emb'].shape[1]
    V = params['wd'].shape[1]
    L = num_layers

    if b_tile is None:
        b_tile = B
    assert B % b_tile == 0
    # second-to-last block dims must be a multiple of 8 unless they span the full axis
    assert b_tile == B or b_tile % 8 == 0
    assert T_enc % 8 == 0, "T_enc must be sublane-aligned for the fused keys projection"

    # TODO(synk): nn.Embedding is a data-dependent gather with no clean BlockSpec form;
    # it is done with plain-JAX indexing here, everything downstream runs in the kernel.
    x_tbe = jnp.transpose(params['emb'][X_ids], (1, 0, 2)).astype(jnp.float32)  # (T, B, E)

    if enc_valid_lens is None:
        vl = jnp.full((B, 1), T_enc, dtype=jnp.int32)
    else:
        vl = enc_valid_lens.reshape(B, 1).astype(jnp.int32)

    g0 = params['gru'][0]
    flat_inputs = [x_tbe, enc_outputs.astype(jnp.float32), vl,
                   params['wq'], params['wk'], params['wv'],
                   hidden_state.astype(jnp.float32),
                   g0['wi_ctx'], g0['wi_x'], g0['wh'], g0['bi'], g0['bh']]
    for l in range(1, L):
        g = params['gru'][l]
        flat_inputs += [g['wi'], g['wh'], g['bi'], g['bh']]
    flat_inputs += [params['wd'], params['bd']]

    def invariant(arr):
        # grid-invariant block: DMA'd into VMEM once, reused for every grid step
        n = arr.ndim
        return pl.BlockSpec(arr.shape, lambda bt, t, _n=n: (0,) * _n)

    in_specs = [
        pl.BlockSpec((1, b_tile, E), lambda bt, t: (t, bt, 0)),        # embedded x, per step
        pl.BlockSpec((b_tile, T_enc, H), lambda bt, t: (bt, 0, 0)),    # encoder outputs
        pl.BlockSpec((b_tile, 1), lambda bt, t: (bt, 0)),              # valid lens
        invariant(params['wq']), invariant(params['wk']), invariant(params['wv']),
        pl.BlockSpec((L, b_tile, H), lambda bt, t: (0, bt, 0)),        # initial hidden
    ]
    in_specs += [invariant(a) for a in flat_inputs[7:]]

    out_shape = (jax.ShapeDtypeStruct((T_dec, B, V), jnp.float32),     # logits (time-major)
                 jax.ShapeDtypeStruct((T_dec, B, T_enc), jnp.float32),  # attention weights
                 jax.ShapeDtypeStruct((L, B, H), jnp.float32))          # final hidden state
    out_specs = (pl.BlockSpec((1, b_tile, V), lambda bt, t: (t, bt, 0)),
                 pl.BlockSpec((1, b_tile, T_enc), lambda bt, t: (t, bt, 0)),
                 pl.BlockSpec((L, b_tile, H), lambda bt, t: (0, bt, 0)))

    scratch_shapes = [pltpu.VMEM((b_tile, T_enc, H), jnp.float32),     # cached W_k(enc)
                      pltpu.VMEM((L, b_tile, H), jnp.float32)]         # carried GRU hidden

    logits_tbv, attn_tbk, h_final = pl.pallas_call(
        make_decoder_kernel(L),
        out_shape=out_shape,
        grid_spec=pltpu.PrefetchScalarGridSpec(
            num_scalar_prefetch=0,
            grid=(B // b_tile, T_dec),
            in_specs=in_specs,
            out_specs=out_specs,
            scratch_shapes=scratch_shapes),
        compiler_params=pltpu.CompilerParams(
            # batch tiles independent (feeds 2 TCs on v7x); decode steps carry state
            dimension_semantics=("parallel", "arbitrary"),
            vmem_limit_bytes=32 * 1024 * 1024),
    )(*flat_inputs)

    logits = jnp.transpose(logits_tbv, (1, 0, 2))      # (B, T_dec, V), as outputs.permute(1,0,2)
    return logits, [enc_outputs, h_final, enc_valid_lens], attn_tbk


# ----------------------------------------------------------------------------------
# Pure-JAX reference (mirrors the PyTorch module in eval mode)
# ----------------------------------------------------------------------------------
def ref_forward(X_ids, state, p, num_layers):
    enc_outputs, h0, valid_lens = state
    B, T_dec = X_ids.shape
    _, T_enc, H = enc_outputs.shape

    def mm(a, b):
        return jnp.dot(a, b, precision=jax.lax.Precision.HIGHEST)

    xs = jnp.transpose(p['emb'][X_ids], (1, 0, 2))                     # (T_dec, B, E)
    keys = mm(enc_outputs.reshape(B * T_enc, H), p['wk']).reshape(B, T_enc, H)
    h = h0
    outs, attns = [], []
    for t in range(T_dec):
        x = xs[t]
        q = mm(h[-1], p['wq'])
        feat = jnp.tanh(keys + q[:, None, :])
        scores = jnp.sum(feat * p['wv'][None, :, :], axis=-1)          # (B, T_enc)
        if valid_lens is not None:
            col = jnp.arange(T_enc)[None, :]
            scores = jnp.where(col < valid_lens[:, None], scores, -1.0e6)
        w = jax.nn.softmax(scores, axis=-1)
        attns.append(w)
        context = jnp.sum(w[:, :, None] * enc_outputs, axis=1)         # (B, H)

        new_h, layer_in = [], None
        for l in range(num_layers):
            g = p['gru'][l]
            if l == 0:
                gi = mm(context, g['wi_ctx']) + mm(x, g['wi_x']) + g['bi']
            else:
                gi = mm(layer_in, g['wi']) + g['bi']
            gh = mm(h[l], g['wh']) + g['bh']
            r = jax.nn.sigmoid(gi[:, :H] + gh[:, :H])
            z = jax.nn.sigmoid(gi[:, H:2 * H] + gh[:, H:2 * H])
            n = jnp.tanh(gi[:, 2 * H:] + r * gh[:, 2 * H:])
            hn = (1.0 - z) * n + z * h[l]
            new_h.append(hn)
            layer_in = hn
        h = jnp.stack(new_h, axis=0)
        outs.append(mm(layer_in, p['wd']) + p['bd'])

    logits = jnp.transpose(jnp.stack(outs, axis=0), (1, 0, 2))         # (B, T_dec, V)
    return logits, h, jnp.stack(attns, axis=0)


# ----------------------------------------------------------------------------------
if __name__ == "__main__":
    B, T_dec, T_enc = 2, 6, 8
    V, E, H, L = 128, 16, 32, 2

    key = jax.random.PRNGKey(0)
    ks = jax.random.split(key, 20)

    def nrm(k, shape, s):
        return s * jax.random.normal(k, shape, jnp.float32)

    params = {
        'emb': nrm(ks[0], (V, E), 0.5),
        'wq': nrm(ks[1], (H, H), 0.2),
        'wk': nrm(ks[2], (H, H), 0.2),
        'wv': nrm(ks[3], (1, H), 0.2),
        'wd': nrm(ks[4], (H, V), 0.2),
        'bd': nrm(ks[5], (1, V), 0.1),
        'gru': [
            {'wi_ctx': nrm(ks[6], (H, 3 * H), 0.2),     # layer 0, context part of W_ih
             'wi_x':   nrm(ks[7], (E, 3 * H), 0.2),     # layer 0, embedded-x part of W_ih
             'wh':     nrm(ks[8], (H, 3 * H), 0.2),
             'bi':     nrm(ks[9], (1, 3 * H), 0.1),
             'bh':     nrm(ks[10], (1, 3 * H), 0.1)},
            {'wi': nrm(ks[11], (H, 3 * H), 0.2),
             'wh': nrm(ks[12], (H, 3 * H), 0.2),
             'bi': nrm(ks[13], (1, 3 * H), 0.1),
             'bh': nrm(ks[14], (1, 3 * H), 0.1)},
        ],
    }

    X_ids = jax.random.randint(ks[15], (B, T_dec), 0, V)
    enc_outputs = nrm(ks[16], (B, T_enc, H), 1.0)
    h0 = nrm(ks[17], (L, B, H), 0.5)
    enc_valid_lens = jnp.array([5, 8], dtype=jnp.int32)
    state = (enc_outputs, h0, enc_valid_lens)

    logits, new_state, attn_w = seq2seq_attention_decoder(X_ids, state, params, num_layers=L)
    logits = jax.block_until_ready(logits)
    h_final = new_state[1]

    ref_logits, ref_h, ref_attn = ref_forward(X_ids, state, params, L)

    assert logits.shape == (B, T_dec, V)
    assert h_final.shape == (L, B, H)
    assert attn_w.shape == (T_dec, B, T_enc)

    for name, got, want in (("logits", logits, ref_logits),
                            ("hidden", h_final, ref_h),
                            ("attn", attn_w, ref_attn)):
        err = float(jnp.max(jnp.abs(got - want)))
        assert jnp.allclose(got, want, atol=1e-2, rtol=1e-2), \
            f"{name} mismatch vs JAX reference (max abs err {err})"

    print("KERNEL_OK")
</pallas_src>

<mosaic_0001>
module attributes {stable_mosaic.version = 11 : i64} {
  func.func @kernel(%arg0: i32, %arg1: i32, %arg2: memref<1x2x16xf32, #tpu.memory_space<vmem>>, %arg3: memref<2x8x32xf32, #tpu.memory_space<vmem>>, %arg4: memref<2x1xi32, #tpu.memory_space<vmem>>, %arg5: memref<32x32xf32, #tpu.memory_space<vmem>>, %arg6: memref<32x32xf32, #tpu.memory_space<vmem>>, %arg7: memref<1x32xf32, #tpu.memory_space<vmem>>, %arg8: memref<2x2x32xf32, #tpu.memory_space<vmem>>, %arg9: memref<32x96xf32, #tpu.memory_space<vmem>>, %arg10: memref<16x96xf32, #tpu.memory_space<vmem>>, %arg11: memref<32x96xf32, #tpu.memory_space<vmem>>, %arg12: memref<1x96xf32, #tpu.memory_space<vmem>>, %arg13: memref<1x96xf32, #tpu.memory_space<vmem>>, %arg14: memref<32x96xf32, #tpu.memory_space<vmem>>, %arg15: memref<32x96xf32, #tpu.memory_space<vmem>>, %arg16: memref<1x96xf32, #tpu.memory_space<vmem>>, %arg17: memref<1x96xf32, #tpu.memory_space<vmem>>, %arg18: memref<32x128xf32, #tpu.memory_space<vmem>>, %arg19: memref<1x128xf32, #tpu.memory_space<vmem>>, %arg20: memref<1x2x128xf32, #tpu.memory_space<vmem>>, %arg21: memref<1x2x8xf32, #tpu.memory_space<vmem>>, %arg22: memref<2x2x32xf32, #tpu.memory_space<vmem>>, %arg23: memref<2x8x32xf32, #tpu.memory_space<vmem>>, %arg24: memref<2x2x32xf32, #tpu.memory_space<vmem>>) attributes {dimension_semantics = [#tpu.dimension_semantics<parallel>, #tpu.dimension_semantics<arbitrary>], iteration_bounds = array<i64: 1, 6>, scalar_prefetch = 0 : i64, scratch_operands = 2 : i64, tpu.core_type = #tpu.core_type<tc>, window_params = [{transform_indices = @transform_0, window_bounds = array<i64: 1, 2, 16>}, {transform_indices = @transform_1, window_bounds = array<i64: 2, 8, 32>}, {transform_indices = @transform_2, window_bounds = array<i64: 2, 1>}, {pipeline_mode = #tpu.pipeline_mode<synchronous>, transform_indices = @transform_3, window_bounds = array<i64: 32, 32>}, {pipeline_mode = #tpu.pipeline_mode<synchronous>, transform_indices = @transform_4, window_bounds = array<i64: 32, 32>}, {pipeline_mode = #tpu.pipeline_mode<synchronous>, transform_indices = @transform_5, window_bounds = array<i64: 1, 32>}, {transform_indices = @transform_6, window_bounds = array<i64: 2, 2, 32>}, {pipeline_mode = #tpu.pipeline_mode<synchronous>, transform_indices = @transform_7, window_bounds = array<i64: 32, 96>}, {pipeline_mode = #tpu.pipeline_mode<synchronous>, transform_indices = @transform_8, window_bounds = array<i64: 16, 96>}, {pipeline_mode = #tpu.pipeline_mode<synchronous>, transform_indices = @transform_9, window_bounds = array<i64: 32, 96>}, {pipeline_mode = #tpu.pipeline_mode<synchronous>, transform_indices = @transform_10, window_bounds = array<i64: 1, 96>}, {pipeline_mode = #tpu.pipeline_mode<synchronous>, transform_indices = @transform_11, window_bounds = array<i64: 1, 96>}, {pipeline_mode = #tpu.pipeline_mode<synchronous>, transform_indices = @transform_12, window_bounds = array<i64: 32, 96>}, {pipeline_mode = #tpu.pipeline_mode<synchronous>, transform_indices = @transform_13, window_bounds = array<i64: 32, 96>}, {pipeline_mode = #tpu.pipeline_mode<synchronous>, transform_indices = @transform_14, window_bounds = array<i64: 1, 96>}, {pipeline_mode = #tpu.pipeline_mode<synchronous>, transform_indices = @transform_15, window_bounds = array<i64: 1, 96>}, {pipeline_mode = #tpu.pipeline_mode<synchronous>, transform_indices = @transform_16, window_bounds = array<i64: 32, 128>}, {pipeline_mode = #tpu.pipeline_mode<synchronous>, transform_indices = @transform_17, window_bounds = array<i64: 1, 128>}, {transform_indices = @transform_18, window_bounds = array<i64: 1, 2, 128>}, {transform_indices = @transform_19, window_bounds = array<i64: 1, 2, 8>}, {transform_indices = @transform_20, window_bounds = array<i64: 2, 2, 32>}]} {
    %c0_i32 = arith.constant 0 : i32
    %0 = arith.cmpi eq, %arg1, %c0_i32 : i32
    %1 = arith.extui %0 : i1 to i32
    %c0_i32_0 = arith.constant 0 : i32
    %2 = arith.cmpi ne, %1, %c0_i32_0 : i32
    scf.if %2 {
      %c0_88 = arith.constant 0 : index
      %c0_89 = arith.constant 0 : index
      %c0_90 = arith.constant 0 : index
      %145 = vector.load %arg3[%c0_88, %c0_89, %c0_90] : memref<2x8x32xf32, #tpu.memory_space<vmem>>, vector<2x8x32xf32>
      %146 = vector.shape_cast %145 : vector<2x8x32xf32> to vector<16x32xf32>
      %c0_91 = arith.constant 0 : index
      %c0_92 = arith.constant 0 : index
      %147 = vector.load %arg6[%c0_91, %c0_92] : memref<32x32xf32, #tpu.memory_space<vmem>>, vector<32x32xf32>
      %cst_93 = arith.constant dense<0.000000e+00> : vector<16x32xf32>
      %148 = tpu.matmul %146, %147, %cst_93 {dimension_numbers = #tpu.dot_dimension_numbers<[1], [0], [0], [1], [0, 0, 1, 1], [], []>} : vector<16x32xf32>, vector<32x32xf32>, vector<16x32xf32> -> vector<16x32xf32>
      %149 = vector.shape_cast %148 : vector<16x32xf32> to vector<2x8x32xf32>
      %c0_94 = arith.constant 0 : index
      %c0_95 = arith.constant 0 : index
      %c0_96 = arith.constant 0 : index
      %150 = vector.load %arg23[%c0_94, %c0_95, %c0_96] : memref<2x8x32xf32, #tpu.memory_space<vmem>>, vector<2x8x32xf32>
      tpu.vector_store %arg23[%c0_94, %c0_95, %c0_96], %149 {strides = array<i32>} : memref<2x8x32xf32, #tpu.memory_space<vmem>>, vector<2x8x32xf32>,
      %c0_97 = arith.constant 0 : index
      %c0_98 = arith.constant 0 : index
      %c0_99 = arith.constant 0 : index
      %151 = vector.load %arg8[%c0_97, %c0_98, %c0_99] : memref<2x2x32xf32, #tpu.memory_space<vmem>>, vector<2x2x32xf32>
      %c0_100 = arith.constant 0 : index
      %c0_101 = arith.constant 0 : index
      %c0_102 = arith.constant 0 : index
      %152 = vector.load %arg24[%c0_100, %c0_101, %c0_102] : memref<2x2x32xf32, #tpu.memory_space<vmem>>, vector<2x2x32xf32>
      tpu.vector_store %arg24[%c0_100, %c0_101, %c0_102], %151 {strides = array<i32>} : memref<2x2x32xf32, #tpu.memory_space<vmem>>, vector<2x2x32xf32>,
    } else {
    }
    %c0 = arith.constant 0 : index
    %c0_1 = arith.constant 0 : index
    %c0_2 = arith.constant 0 : index
    %3 = vector.load %arg2[%c0, %c0_1, %c0_2] : memref<1x2x16xf32, #tpu.memory_space<vmem>>, vector<1x2x16xf32>
    %4 = vector.shape_cast %3 : vector<1x2x16xf32> to vector<2x16xf32>
    %c1 = arith.constant 1 : index
    %c0_3 = arith.constant 0 : index
    %c0_4 = arith.constant 0 : index
    %5 = vector.load %arg24[%c1, %c0_3, %c0_4] : memref<2x2x32xf32, #tpu.memory_space<vmem>>, vector<1x2x32xf32>
    %6 = vector.shape_cast %5 : vector<1x2x32xf32> to vector<2x32xf32>
    %c0_5 = arith.constant 0 : index
    %c0_6 = arith.constant 0 : index
    %7 = vector.load %arg5[%c0_5, %c0_6] : memref<32x32xf32, #tpu.memory_space<vmem>>, vector<32x32xf32>
    %cst = arith.constant dense<0.000000e+00> : vector<2x32xf32>
    %8 = tpu.matmul %6, %7, %cst {dimension_numbers = #tpu.dot_dimension_numbers<[1], [0], [0], [1], [0, 0, 1, 1], [], []>} : vector<2x32xf32>, vector<32x32xf32>, vector<2x32xf32> -> vector<2x32xf32>
    %c0_7 = arith.constant 0 : index
    %c0_8 = arith.constant 0 : index
    %c0_9 = arith.constant 0 : index
    %9 = vector.load %arg23[%c0_7, %c0_8, %c0_9] : memref<2x8x32xf32, #tpu.memory_space<vmem>>, vector<2x8x32xf32>
    %10 = vector.shape_cast %8 : vector<2x32xf32> to vector<2x1x32xf32>
    %11 = vector.broadcast %10 : vector<2x1x32xf32> to vector<2x8x32xf32>
    %12 = arith.addf %9, %11 : vector<2x8x32xf32>
    %13 = math.tanh %12 : vector<2x8x32xf32>
    %c0_10 = arith.constant 0 : index
    %c0_11 = arith.constant 0 : index
    %14 = vector.load %arg7[%c0_10, %c0_11] : memref<1x32xf32, #tpu.memory_space<vmem>>, vector<1x32xf32>
    %15 = vector.shape_cast %14 : vector<1x32xf32> to vector<1x1x32xf32>
    %16 = vector.broadcast %15 : vector<1x1x32xf32> to vector<2x8x32xf32>
    %17 = arith.mulf %13, %16 : vector<2x8x32xf32>
    %cst_12 = arith.constant dense<0.000000e+00> : vector<2x8xf32>
    %18 = vector.multi_reduction <add>, %17, %cst_12 [2] : vector<2x8x32xf32> to vector<2x8xf32>
    %19 = tpu.iota {dimensions = array<i32: 1>} : vector<2x8xi32>
    %c0_13 = arith.constant 0 : index
    %c0_14 = arith.constant 0 : index
    %20 = vector.load %arg4[%c0_13, %c0_14] : memref<2x1xi32, #tpu.memory_space<vmem>>, vector<2x1xi32>
    %21 = vector.broadcast %20 : vector<2x1xi32> to vector<2x8xi32>
    %22 = arith.cmpi slt, %19, %21 : vector<2x8xi32>
    %cst_15 = arith.constant -1.000000e+06 : f32
    %23 = vector.broadcast %cst_15 : f32 to vector<2x8xf32>
    %24 = arith.select %22, %18, %23 : vector<2x8xi1>, vector<2x8xf32>
    %cst_16 = arith.constant dense<0xFF800000> : vector<2xf32>
    %25 = vector.multi_reduction <maximumf>, %24, %cst_16 [1] : vector<2x8xf32> to vector<2xf32>
    %26 = vector.shape_cast %25 : vector<2xf32> to vector<2x1xf32>
    %27 = vector.broadcast %26 : vector<2x1xf32> to vector<2x8xf32>
    %28 = arith.subf %24, %27 : vector<2x8xf32>
    %29 = math.exp %28 : vector<2x8xf32>
    %cst_17 = arith.constant dense<0.000000e+00> : vector<2xf32>
    %30 = vector.multi_reduction <add>, %29, %cst_17 [1] : vector<2x8xf32> to vector<2xf32>
    %31 = vector.shape_cast %30 : vector<2xf32> to vector<2x1xf32>
    %32 = vector.broadcast %31 : vector<2x1xf32> to vector<2x8xf32>
    %33 = arith.divf %29, %32 : vector<2x8xf32>
    %c0_18 = arith.constant 0 : index
    %c0_19 = arith.constant 0 : index
    %c0_20 = arith.constant 0 : index
    %34 = vector.load %arg21[%c0_18, %c0_19, %c0_20] : memref<1x2x8xf32, #tpu.memory_space<vmem>>, vector<1x2x8xf32>
    %35 = vector.shape_cast %34 : vector<1x2x8xf32> to vector<2x8xf32>
    %36 = vector.shape_cast %33 : vector<2x8xf32> to vector<1x2x8xf32>
    tpu.vector_store %arg21[%c0_18, %c0_19, %c0_20], %36 {strides = array<i32>} : memref<1x2x8xf32, #tpu.memory_space<vmem>>, vector<1x2x8xf32>,
    %37 = vector.shape_cast %33 : vector<2x8xf32> to vector<2x8x1xf32>
    %c0_21 = arith.constant 0 : index
    %c0_22 = arith.constant 0 : index
    %c0_23 = arith.constant 0 : index
    %38 = vector.load %arg3[%c0_21, %c0_22, %c0_23] : memref<2x8x32xf32, #tpu.memory_space<vmem>>, vector<2x8x32xf32>
    %39 = vector.broadcast %37 : vector<2x8x1xf32> to vector<2x8x32xf32>
    %40 = arith.mulf %39, %38 : vector<2x8x32xf32>
    %cst_24 = arith.constant dense<0.000000e+00> : vector<2x32xf32>
    %41 = vector.multi_reduction <add>, %40, %cst_24 [1] : vector<2x8x32xf32> to vector<2x32xf32>
    %c0_25 = arith.constant 0 : index
    %c0_26 = arith.constant 0 : index
    %c0_27 = arith.constant 0 : index
    %42 = vector.load %arg24[%c0_25, %c0_26, %c0_27] : memref<2x2x32xf32, #tpu.memory_space<vmem>>, vector<1x2x32xf32>
    %43 = vector.shape_cast %42 : vector<1x2x32xf32> to vector<2x32xf32>
    %c0_28 = arith.constant 0 : index
    %c0_29 = arith.constant 0 : index
    %44 = vector.load %arg9[%c0_28, %c0_29] : memref<32x96xf32, #tpu.memory_space<vmem>>, vector<32x96xf32>
    %cst_30 = arith.constant dense<0.000000e+00> : vector<2x96xf32>
    %45 = tpu.matmul %41, %44, %cst_30 {dimension_numbers = #tpu.dot_dimension_numbers<[1], [0], [0], [1], [0, 0, 1, 1], [], []>} : vector<2x32xf32>, vector<32x96xf32>, vector<2x96xf32> -> vector<2x96xf32>
    %c0_31 = arith.constant 0 : index
    %c0_32 = arith.constant 0 : index
    %46 = vector.load %arg10[%c0_31, %c0_32] : memref<16x96xf32, #tpu.memory_space<vmem>>, vector<16x96xf32>
    %cst_33 = arith.constant dense<0.000000e+00> : vector<2x96xf32>
    %47 = tpu.matmul %4, %46, %cst_33 {dimension_numbers = #tpu.dot_dimension_numbers<[1], [0], [0], [1], [0, 0, 1, 1], [], []>} : vector<2x16xf32>, vector<16x96xf32>, vector<2x96xf32> -> vector<2x96xf32>
    %48 = arith.addf %45, %47 : vector<2x96xf32>
    %c0_34 = arith.constant 0 : index
    %c0_35 = arith.constant 0 : index
    %49 = vector.load %arg12[%c0_34, %c0_35] : memref<1x96xf32, #tpu.memory_space<vmem>>, vector<1x96xf32>
    %50 = vector.broadcast %49 : vector<1x96xf32> to vector<2x96xf32>
    %51 = arith.addf %48, %50 : vector<2x96xf32>
    %c0_36 = arith.constant 0 : index
    %c0_37 = arith.constant 0 : index
    %52 = vector.load %arg11[%c0_36, %c0_37] : memref<32x96xf32, #tpu.memory_space<vmem>>, vector<32x96xf32>
    %cst_38 = arith.constant dense<0.000000e+00> : vector<2x96xf32>
    %53 = tpu.matmul %43, %52, %cst_38 {dimension_numbers = #tpu.dot_dimension_numbers<[1], [0], [0], [1], [0, 0, 1, 1], [], []>} : vector<2x32xf32>, vector<32x96xf32>, vector<2x96xf32> -> vector<2x96xf32>
    %c0_39 = arith.constant 0 : index
    %c0_40 = arith.constant 0 : index
    %54 = vector.load %arg13[%c0_39, %c0_40] : memref<1x96xf32, #tpu.memory_space<vmem>>, vector<1x96xf32>
    %55 = vector.broadcast %54 : vector<1x96xf32> to vector<2x96xf32>
    %56 = arith.addf %53, %55 : vector<2x96xf32>
    %57 = vector.extract_strided_slice %51 {offsets = [0, 0], sizes = [2, 32], strides = [1, 1]} : vector<2x96xf32> to vector<2x32xf32>
    %58 = vector.extract_strided_slice %56 {offsets = [0, 0], sizes = [2, 32], strides = [1, 1]} : vector<2x96xf32> to vector<2x32xf32>
    %59 = arith.addf %57, %58 : vector<2x32xf32>
    %cst_41 = arith.constant 0.000000e+00 : f32
    %60 = vector.broadcast %cst_41 : f32 to vector<2x32xf32>
    %61 = arith.subf %60, %59 : vector<2x32xf32>
    %62 = math.exp %61 : vector<2x32xf32>
    %cst_42 = arith.constant 1.000000e+00 : f32
    %63 = vector.broadcast %cst_42 : f32 to vector<2x32xf32>
    %64 = arith.addf %63, %62 : vector<2x32xf32>
    %cst_43 = arith.constant 1.000000e+00 : f32
    %65 = vector.broadcast %cst_43 : f32 to vector<2x32xf32>
    %66 = arith.divf %65, %64 : vector<2x32xf32>
    %67 = vector.extract_strided_slice %51 {offsets = [0, 32], sizes = [2, 32], strides = [1, 1]} : vector<2x96xf32> to vector<2x32xf32>
    %68 = vector.extract_strided_slice %56 {offsets = [0, 32], sizes = [2, 32], strides = [1, 1]} : vector<2x96xf32> to vector<2x32xf32>
    %69 = arith.addf %67, %68 : vector<2x32xf32>
    %cst_44 = arith.constant 0.000000e+00 : f32
    %70 = vector.broadcast %cst_44 : f32 to vector<2x32xf32>
    %71 = arith.subf %70, %69 : vector<2x32xf32>
    %72 = math.exp %71 : vector<2x32xf32>
    %cst_45 = arith.constant 1.000000e+00 : f32
    %73 = vector.broadcast %cst_45 : f32 to vector<2x32xf32>
    %74 = arith.addf %73, %72 : vector<2x32xf32>
    %cst_46 = arith.constant 1.000000e+00 : f32
    %75 = vector.broadcast %cst_46 : f32 to vector<2x32xf32>
    %76 = arith.divf %75, %74 : vector<2x32xf32>
    %77 = vector.extract_strided_slice %51 {offsets = [0, 64], sizes = [2, 32], strides = [1, 1]} : vector<2x96xf32> to vector<2x32xf32>
    %78 = vector.extract_strided_slice %56 {offsets = [0, 64], sizes = [2, 32], strides = [1, 1]} : vector<2x96xf32> to vector<2x32xf32>
    %79 = arith.mulf %66, %78 : vector<2x32xf32>
    %80 = arith.addf %77, %79 : vector<2x32xf32>
    %81 = math.tanh %80 : vector<2x32xf32>
    %cst_47 = arith.constant 1.000000e+00 : f32
    %82 = vector.broadcast %cst_47 : f32 to vector<2x32xf32>
    %83 = arith.subf %82, %76 : vector<2x32xf32>
    %84 = arith.mulf %83, %81 : vector<2x32xf32>
    %85 = arith.mulf %76, %43 : vector<2x32xf32>
    %86 = arith.addf %84, %85 : vector<2x32xf32>
    %c0_48 = arith.constant 0 : index
    %c0_49 = arith.constant 0 : index
    %c0_50 = arith.constant 0 : index
    %87 = vector.load %arg24[%c0_48, %c0_49, %c0_50] : memref<2x2x32xf32, #tpu.memory_space<vmem>>, vector<1x2x32xf32>
    %88 = vector.shape_cast %87 : vector<1x2x32xf32> to vector<2x32xf32>
    %89 = vector.shape_cast %86 : vector<2x32xf32> to vector<1x2x32xf32>
    tpu.vector_store %arg24[%c0_48, %c0_49, %c0_50], %89 {strides = array<i32>} : memref<2x2x32xf32, #tpu.memory_space<vmem>>, vector<1x2x32xf32>,
    %c1_51 = arith.constant 1 : index
    %c0_52 = arith.constant 0 : index
    %c0_53 = arith.constant 0 : index
    %90 = vector.load %arg24[%c1_51, %c0_52, %c0_53] : memref<2x2x32xf32, #tpu.memory_space<vmem>>, vector<1x2x32xf32>
    %91 = vector.shape_cast %90 : vector<1x2x32xf32> to vector<2x32xf32>
    %c0_54 = arith.constant 0 : index
    %c0_55 = arith.constant 0 : index
    %92 = vector.load %arg14[%c0_54, %c0_55] : memref<32x96xf32, #tpu.memory_space<vmem>>, vector<32x96xf32>
    %cst_56 = arith.constant dense<0.000000e+00> : vector<2x96xf32>
    %93 = tpu.matmul %86, %92, %cst_56 {dimension_numbers = #tpu.dot_dimension_numbers<[1], [0], [0], [1], [0, 0, 1, 1], [], []>} : vector<2x32xf32>, vector<32x96xf32>, vector<2x96xf32> -> vector<2x96xf32>
    %c0_57 = arith.constant 0 : index
    %c0_58 = arith.constant 0 : index
    %94 = vector.load %arg16[%c0_57, %c0_58] : memref<1x96xf32, #tpu.memory_space<vmem>>, vector<1x96xf32>
    %95 = vector.broadcast %94 : vector<1x96xf32> to vector<2x96xf32>
    %96 = arith.addf %93, %95 : vector<2x96xf32>
    %c0_59 = arith.constant 0 : index
    %c0_60 = arith.constant 0 : index
    %97 = vector.load %arg15[%c0_59, %c0_60] : memref<32x96xf32, #tpu.memory_space<vmem>>, vector<32x96xf32>
    %cst_61 = arith.constant dense<0.000000e+00> : vector<2x96xf32>
    %98 = tpu.matmul %91, %97, %cst_61 {dimension_numbers = #tpu.dot_dimension_numbers<[1], [0], [0], [1], [0, 0, 1, 1], [], []>} : vector<2x32xf32>, vector<32x96xf32>, vector<2x96xf32> -> vector<2x96xf32>
    %c0_62 = arith.constant 0 : index
    %c0_63 = arith.constant 0 : index
    %99 = vector.load %arg17[%c0_62, %c0_63] : memref<1x96xf32, #tpu.memory_space<vmem>>, vector<1x96xf32>
    %100 = vector.broadcast %99 : vector<1x96xf32> to vector<2x96xf32>
    %101 = arith.addf %98, %100 : vector<2x96xf32>
    %102 = vector.extract_strided_slice %96 {offsets = [0, 0], sizes = [2, 32], strides = [1, 1]} : vector<2x96xf32> to vector<2x32xf32>
    %103 = vector.extract_strided_slice %101 {offsets = [0, 0], sizes = [2, 32], strides = [1, 1]} : vector<2x96xf32> to vector<2x32xf32>
    %104 = arith.addf %102, %103 : vector<2x32xf32>
    %cst_64 = arith.constant 0.000000e+00 : f32
    %105 = vector.broadcast %cst_64 : f32 to vector<2x32xf32>
    %106 = arith.subf %105, %104 : vector<2x32xf32>
    %107 = math.exp %106 : vector<2x32xf32>
    %cst_65 = arith.constant 1.000000e+00 : f32
    %108 = vector.broadcast %cst_65 : f32 to vector<2x32xf32>
    %109 = arith.addf %108, %107 : vector<2x32xf32>
    %cst_66 = arith.constant 1.000000e+00 : f32
    %110 = vector.broadcast %cst_66 : f32 to vector<2x32xf32>
    %111 = arith.divf %110, %109 : vector<2x32xf32>
    %112 = vector.extract_strided_slice %96 {offsets = [0, 32], sizes = [2, 32], strides = [1, 1]} : vector<2x96xf32> to vector<2x32xf32>
    %113 = vector.extract_strided_slice %101 {offsets = [0, 32], sizes = [2, 32], strides = [1, 1]} : vector<2x96xf32> to vector<2x32xf32>
    %114 = arith.addf %112, %113 : vector<2x32xf32>
    %cst_67 = arith.constant 0.000000e+00 : f32
    %115 = vector.broadcast %cst_67 : f32 to vector<2x32xf32>
    %116 = arith.subf %115, %114 : vector<2x32xf32>
    %117 = math.exp %116 : vector<2x32xf32>
    %cst_68 = arith.constant 1.000000e+00 : f32
    %118 = vector.broadcast %cst_68 : f32 to vector<2x32xf32>
    %119 = arith.addf %118, %117 : vector<2x32xf32>
    %cst_69 = arith.constant 1.000000e+00 : f32
    %120 = vector.broadcast %cst_69 : f32 to vector<2x32xf32>
    %121 = arith.divf %120, %119 : vector<2x32xf32>
    %122 = vector.extract_strided_slice %96 {offsets = [0, 64], sizes = [2, 32], strides = [1, 1]} : vector<2x96xf32> to vector<2x32xf32>
    %123 = vector.extract_strided_slice %101 {offsets = [0, 64], sizes = [2, 32], strides = [1, 1]} : vector<2x96xf32> to vector<2x32xf32>
    %124 = arith.mulf %111, %123 : vector<2x32xf32>
    %125 = arith.addf %122, %124 : vector<2x32xf32>
    %126 = math.tanh %125 : vector<2x32xf32>
    %cst_70 = arith.constant 1.000000e+00 : f32
    %127 = vector.broadcast %cst_70 : f32 to vector<2x32xf32>
    %128 = arith.subf %127, %121 : vector<2x32xf32>
    %129 = arith.mulf %128, %126 : vector<2x32xf32>
    %130 = arith.mulf %121, %91 : vector<2x32xf32>
    %131 = arith.addf %129, %130 : vector<2x32xf32>
    %c1_71 = arith.constant 1 : index
    %c0_72 = arith.constant 0 : index
    %c0_73 = arith.constant 0 : index
    %132 = vector.load %arg24[%c1_71, %c0_72, %c0_73] : memref<2x2x32xf32, #tpu.memory_space<vmem>>, vector<1x2x32xf32>
    %133 = vector.shape_cast %132 : vector<1x2x32xf32> to vector<2x32xf32>
    %134 = vector.shape_cast %131 : vector<2x32xf32> to vector<1x2x32xf32>
    tpu.vector_store %arg24[%c1_71, %c0_72, %c0_73], %134 {strides = array<i32>} : memref<2x2x32xf32, #tpu.memory_space<vmem>>, vector<1x2x32xf32>,
    %c0_74 = arith.constant 0 : index
    %c0_75 = arith.constant 0 : index
    %135 = vector.load %arg18[%c0_74, %c0_75] : memref<32x128xf32, #tpu.memory_space<vmem>>, vector<32x128xf32>
    %cst_76 = arith.constant dense<0.000000e+00> : vector<2x128xf32>
    %136 = tpu.matmul %131, %135, %cst_76 {dimension_numbers = #tpu.dot_dimension_numbers<[1], [0], [0], [1], [0, 0, 1, 1], [], []>} : vector<2x32xf32>, vector<32x128xf32>, vector<2x128xf32> -> vector<2x128xf32>
    %c0_77 = arith.constant 0 : index
    %c0_78 = arith.constant 0 : index
    %137 = vector.load %arg19[%c0_77, %c0_78] : memref<1x128xf32, #tpu.memory_space<vmem>>, vector<1x128xf32>
    %138 = vector.broadcast %137 : vector<1x128xf32> to vector<2x128xf32>
    %139 = arith.addf %136, %138 : vector<2x128xf32>
    %c0_79 = arith.constant 0 : index
    %c0_80 = arith.constant 0 : index
    %c0_81 = arith.constant 0 : index
    %140 = vector.load %arg20[%c0_79, %c0_80, %c0_81] : memref<1x2x128xf32, #tpu.memory_space<vmem>>, vector<1x2x128xf32>
    %141 = vector.shape_cast %140 : vector<1x2x128xf32> to vector<2x128xf32>
    %142 = vector.shape_cast %139 : vector<2x128xf32> to vector<1x2x128xf32>
    tpu.vector_store %arg20[%c0_79, %c0_80, %c0_81], %142 {strides = array<i32>} : memref<1x2x128xf32, #tpu.memory_space<vmem>>, vector<1x2x128xf32>,
    %c0_82 = arith.constant 0 : index
    %c0_83 = arith.constant 0 : index
    %c0_84 = arith.constant 0 : index
    %143 = vector.load %arg24[%c0_82, %c0_83, %c0_84] : memref<2x2x32xf32, #tpu.memory_space<vmem>>, vector<2x2x32xf32>
    %c0_85 = arith.constant 0 : index
    %c0_86 = arith.constant 0 : index
    %c0_87 = arith.constant 0 : index
    %144 = vector.load %arg22[%c0_85, %c0_86, %c0_87] : memref<2x2x32xf32, #tpu.memory_space<vmem>>, vector<2x2x32xf32>
    tpu.vector_store %arg22[%c0_85, %c0_86, %c0_87], %143 {strides = array<i32>} : memref<2x2x32xf32, #tpu.memory_space<vmem>>, vector<2x2x32xf32>,
    return
  }
  func.func @transform_0(%arg0: i32, %arg1: i32) -> (i32, i32, i32) {
    %c0_i32 = arith.constant 0 : i32
    %c0_i32_0 = arith.constant 0 : i32
    return %arg1, %arg0, %c0_i32 : i32, i32, i32
  }
  func.func @transform_1(%arg0: i32, %arg1: i32) -> (i32, i32, i32) {
    %c0_i32 = arith.constant 0 : i32
    %c0_i32_0 = arith.constant 0 : i32
    %c0_i32_1 = arith.constant 0 : i32
    return %arg0, %c0_i32, %c0_i32_0 : i32, i32, i32
  }
  func.func @transform_2(%arg0: i32, %arg1: i32) -> (i32, i32) {
    %c0_i32 = arith.constant 0 : i32
    %c0_i32_0 = arith.constant 0 : i32
    return %arg0, %c0_i32 : i32, i32
  }
  func.func @transform_3(%arg0: i32, %arg1: i32) -> (i32, i32) {
    %c0_i32 = arith.constant 0 : i32
    %c0_i32_0 = arith.constant 0 : i32
    %c0_i32_1 = arith.constant 0 : i32
    return %c0_i32, %c0_i32_0 : i32, i32
  }
  func.func @transform_4(%arg0: i32, %arg1: i32) -> (i32, i32) {
    %c0_i32 = arith.constant 0 : i32
    %c0_i32_0 = arith.constant 0 : i32
    %c0_i32_1 = arith.constant 0 : i32
    return %c0_i32, %c0_i32_0 : i32, i32
  }
  func.func @transform_5(%arg0: i32, %arg1: i32) -> (i32, i32) {
    %c0_i32 = arith.constant 0 : i32
    %c0_i32_0 = arith.constant 0 : i32
    %c0_i32_1 = arith.constant 0 : i32
    return %c0_i32, %c0_i32_0 : i32, i32
  }
  func.func @transform_6(%arg0: i32, %arg1: i32) -> (i32, i32, i32) {
    %c0_i32 = arith.constant 0 : i32
    %c0_i32_0 = arith.constant 0 : i32
    %c0_i32_1 = arith.constant 0 : i32
    return %c0_i32, %arg0, %c0_i32_0 : i32, i32, i32
  }
  func.func @transform_7(%arg0: i32, %arg1: i32) -> (i32, i32) {
    %c0_i32 = arith.constant 0 : i32
    %c0_i32_0 = arith.constant 0 : i32
    %c0_i32_1 = arith.constant 0 : i32
    return %c0_i32, %c0_i32_0 : i32, i32
  }
  func.func @transform_8(%arg0: i32, %arg1: i32) -> (i32, i32) {
    %c0_i32 = arith.constant 0 : i32
    %c0_i32_0 = arith.constant 0 : i32
    %c0_i32_1 = arith.constant 0 : i32
    return %c0_i32, %c0_i32_0 : i32, i32
  }
  func.func @transform_9(%arg0: i32, %arg1: i32) -> (i32, i32) {
    %c0_i32 = arith.constant 0 : i32
    %c0_i32_0 = arith.constant 0 : i32
    %c0_i32_1 = arith.constant 0 : i32
    return %c0_i32, %c0_i32_0 : i32, i32
  }
  func.func @transform_10(%arg0: i32, %arg1: i32) -> (i32, i32) {
    %c0_i32 = arith.constant 0 : i32
    %c0_i32_0 = arith.constant 0 : i32
    %c0_i32_1 = arith.constant 0 : i32
    return %c0_i32, %c0_i32_0 : i32, i32
  }
  func.func @transform_11(%arg0: i32, %arg1: i32) -> (i32, i32) {
    %c0_i32 = arith.constant 0 : i32
    %c0_i32_0 = arith.constant 0 : i32
    %c0_i32_1 = arith.constant 0 : i32
    return %c0_i32, %c0_i32_0 : i32, i32
  }
  func.func @transform_12(%arg0: i32, %arg1: i32) -> (i32, i32) {
    %c0_i32 = arith.constant 0 : i32
    %c0_i32_0 = arith.constant 0 : i32
    %c0_i32_1 = arith.constant 0 : i32
    return %c0_i32, %c0_i32_0 : i32, i32
  }
  func.func @transform_13(%arg0: i32, %arg1: i32) -> (i32, i32) {
    %c0_i32 = arith.constant 0 : i32
    %c0_i32_0 = arith.constant 0 : i32
    %c0_i32_1 = arith.constant 0 : i32
    return %c0_i32, %c0_i32_0 : i32, i32
  }
  func.func @transform_14(%arg0: i32, %arg1: i32) -> (i32, i32) {
    %c0_i32 = arith.constant 0 : i32
    %c0_i32_0 = arith.constant 0 : i32
    %c0_i32_1 = arith.constant 0 : i32
    return %c0_i32, %c0_i32_0 : i32, i32
  }
  func.func @transform_15(%arg0: i32, %arg1: i32) -> (i32, i32) {
    %c0_i32 = arith.constant 0 : i32
    %c0_i32_0 = arith.constant 0 : i32
    %c0_i32_1 = arith.constant 0 : i32
    return %c0_i32, %c0_i32_0 : i32, i32
  }
  func.func @transform_16(%arg0: i32, %arg1: i32) -> (i32, i32) {
    %c0_i32 = arith.constant 0 : i32
    %c0_i32_0 = arith.constant 0 : i32
    %c0_i32_1 = arith.constant 0 : i32
    return %c0_i32, %c0_i32_0 : i32, i32
  }
  func.func @transform_17(%arg0: i32, %arg1: i32) -> (i32, i32) {
    %c0_i32 = arith.constant 0 : i32
    %c0_i32_0 = arith.constant 0 : i32
    %c0_i32_1 = arith.constant 0 : i32
    return %c0_i32, %c0_i32_0 : i32, i32
  }
  func.func @transform_18(%arg0: i32, %arg1: i32) -> (i32, i32, i32) {
    %c0_i32 = arith.constant 0 : i32
    %c0_i32_0 = arith.constant 0 : i32
    return %arg1, %arg0, %c0_i32 : i32, i32, i32
  }
  func.func @transform_19(%arg0: i32, %arg1: i32) -> (i32, i32, i32) {
    %c0_i32 = arith.constant 0 : i32
    %c0_i32_0 = arith.constant 0 : i32
    return %arg1, %arg0, %c0_i32 : i32, i32, i32
  }
  func.func @transform_20(%arg0: i32, %arg1: i32) -> (i32, i32, i32) {
    %c0_i32 = arith.constant 0 : i32
    %c0_i32_0 = arith.constant 0 : i32
    %c0_i32_1 = arith.constant 0 : i32
    return %c0_i32, %arg0, %c0_i32_0 : i32, i32, i32
  }
}

</mosaic_0001>

<llo_original>
// kernel: tpu_custom_call.1
$region0: #{tpu_custom_call.1}
  #allocation0 [shape = 'u32[]', space=smem, size = 0x4, offset = 0x4, fixed_abs, tag = 'smem constant byte address 0x4 - core index']
  #allocation1 [shape = 'u32[144,128]{1,0:T(1,128)}', space=vmem, size = 0x12000, scoped, tag = 'internal scratch']
  #allocation2 [shape = 'f32[2,8,32]{2,1,0:T(8,128)}', space=vmem, size = 0x2000, scoped, tag = 'scratch operand']
  #allocation3 [shape = 'f32[2,2,32]{2,1,0:T(2,128)}', space=vmem, size = 0x800, scoped, tag = 'scratch operand']
  %s0 = inlined_call_operand.hbm [shape: f32[6,2,16], index: 0, kind: input, shape index: {}]
  %s1 = inlined_call_operand.hbm [shape: f32[2,8,32], index: 1, kind: input, shape index: {}]
  %s2 = inlined_call_operand.vmem [shape: s32[2,1], index: 2, kind: input, shape index: {}]
  %s3 = inlined_call_operand.hbm [shape: f32[32,32], index: 3, kind: input, shape index: {}]
  %s4 = inlined_call_operand.hbm [shape: f32[32,32], index: 4, kind: input, shape index: {}]
  %s5 = inlined_call_operand.hbm [shape: f32[1,32], index: 5, kind: input, shape index: {}]
  %s6 = inlined_call_operand.hbm [shape: f32[2,2,32], index: 6, kind: input, shape index: {}]
  %s7 = inlined_call_operand.hbm [shape: f32[32,96], index: 7, kind: input, shape index: {}]
  %s8 = inlined_call_operand.hbm [shape: f32[16,96], index: 8, kind: input, shape index: {}]
  %s9 = inlined_call_operand.vmem [shape: f32[32,96], index: 9, kind: input, shape index: {}]
  %s10 = inlined_call_operand.hbm [shape: f32[1,96], index: 10, kind: input, shape index: {}]
  %s11 = inlined_call_operand.hbm [shape: f32[1,96], index: 11, kind: input, shape index: {}]
  %s12 = inlined_call_operand.hbm [shape: f32[32,96], index: 12, kind: input, shape index: {}]
  %s13 = inlined_call_operand.hbm [shape: f32[32,96], index: 13, kind: input, shape index: {}]
  %s14 = inlined_call_operand.hbm [shape: f32[1,96], index: 14, kind: input, shape index: {}]
  %s15 = inlined_call_operand.hbm [shape: f32[1,96], index: 15, kind: input, shape index: {}]
  %s16 = inlined_call_operand.vmem [shape: f32[32,128], index: 16, kind: input, shape index: {}]
  %s17 = inlined_call_operand.vmem [shape: f32[1,128], index: 17, kind: input, shape index: {}]
  %s18 = inlined_call_operand.hbm [shape: f32[6,2,128], index: 18, kind: output, shape index: {0}]
  %s19 = inlined_call_operand.hbm [shape: f32[6,2,8], index: 19, kind: output, shape index: {1}]
  %s20 = inlined_call_operand.hbm [shape: f32[2,2,32], index: 20, kind: output, shape index: {2}]
  %21 = xla_tuple %s18, %s19, %s20
  %s22 = sld [smem:[#allocation0]]
  $region181: #{tpu_custom_call.1} parent=0
    _
  %s24 = ssub.s32 1, %s22
  %s25 = scalar_select 0, %s24, %s22
  $region1: #{tpu_custom_call.1} parent=0
    #allocation4 [shape = 'u8[2048]{0}', space=vmem, size = 0x800, scoped, tag = 'input window, operand 0']
    #allocation5 [shape = 's32[2]{0}', space=sflag, size = 0x8, scoped, tag = 'scoped memory for tpu_custom_call.1']
    #allocation6 [shape = 's32[2]{0}', space=sflag, size = 0x8, scoped, tag = 'scoped memory for tpu_custom_call.1']
    #allocation7 [shape = 'u8[8192]{0}', space=vmem, size = 0x2000, scoped, tag = 'input window, operand 1, single buffered']
    #allocation8 [shape = 's32[1]{0}', space=sflag, size = 0x4, scoped, tag = 'scoped memory for tpu_custom_call.1']
    #allocation9 [shape = 'u8[16384]{0}', space=vmem, size = 0x4000, scoped, tag = 'input window, operand 3, single buffered']
    #allocation10 [shape = 'u8[16384]{0}', space=vmem, size = 0x4000, scoped, tag = 'input window, operand 4, single buffered']
    #allocation11 [shape = 's32[1]{0}', space=sflag, size = 0x4, scoped, tag = 'scoped memory for tpu_custom_call.1']
    #allocation12 [shape = 'u8[512]{0}', space=vmem, size = 0x400, scoped, tag = 'input window, operand 5, single buffered']
    #allocation13 [shape = 'u8[2048]{0}', space=vmem, size = 0x800, scoped, tag = 'input window, operand 6, single buffered']
    #allocation14 [shape = 's32[1]{0}', space=sflag, size = 0x4, scoped, tag = 'scoped memory for tpu_custom_call.1']
    #allocation15 [shape = 'u8[16384]{0}', space=vmem, size = 0x4000, scoped, tag = 'input window, operand 7, single buffered']
    #allocation16 [shape = 'u8[8192]{0}', space=vmem, size = 0x2000, scoped, tag = 'input window, operand 8, single buffered']
    #allocation17 [shape = 's32[1]{0}', space=sflag, size = 0x4, scoped, tag = 'scoped memory for tpu_custom_call.1']
    #allocation18 [shape = 'u8[512]{0}', space=vmem, size = 0x400, scoped, tag = 'input window, operand 10, single buffered']
    #allocation19 [shape = 'u8[512]{0}', space=vmem, size = 0x400, scoped, tag = 'input window, operand 11, single buffered']
    #allocation20 [shape = 's32[1]{0}', space=sflag, size = 0x4, scoped, tag = 'scoped memory for tpu_custom_call.1']
    #allocation21 [shape = 'u8[16384]{0}', space=vmem, size = 0x4000, scoped, tag = 'input window, operand 12, single buffered']
    #allocation22 [shape = 'u8[16384]{0}', space=vmem, size = 0x4000, scoped, tag = 'input window, operand 13, single buffered']
    #allocation23 [shape = 's32[1]{0}', space=sflag, size = 0x4, scoped, tag = 'scoped memory for tpu_custom_call.1']
    #allocation24 [shape = 'u8[512]{0}', space=vmem, size = 0x400, scoped, tag = 'input window, operand 14, single buffered']
    #allocation25 [shape = 'u8[512]{0}', space=vmem, size = 0x400, scoped, tag = 'input window, operand 15, single buffered']
    #allocation26 [shape = 's32[1]{0}', space=sflag, size = 0x4, scoped, tag = 'scoped memory for tpu_custom_call.1']
    #allocation27 [shape = 'u8[2048]{0}', space=vmem, size = 0x800, scoped, tag = 'output window, operand 0']
    #allocation28 [shape = 'u8[2048]{0}', space=vmem, size = 0x800, scoped, tag = 'output window, operand 1']
    #allocation29 [shape = 's32[2]{0}', space=sflag, size = 0x8, scoped, tag = 'scoped memory for tpu_custom_call.1']
    #allocation30 [shape = 'u8[2048]{0}', space=vmem, size = 0x800, scoped, tag = 'output window, operand 2, single buffered']
    %26 = vsyncpa [#allocation5], 0
    %s27 = scalar_lea.sflag [#allocation5], 1
    %28 = vsyncpa %s27, 0
    %29 = vsyncpa [#allocation8], 0
    %30 = vsyncpa [#allocation11], 0
    %31 = vsyncpa [#allocation14], 0
    %32 = vsyncpa [#allocation17], 0
    %33 = vsyncpa [#allocation20], 0
    %34 = vsyncpa [#allocation23], 0
    %35 = vsyncpa [#allocation26], 0
    %36 = vsyncpa [#allocation6], 0
    %s37 = scalar_lea.sflag [#allocation6], 1
    %38 = vsyncpa %s37, 0
    %39 = vsyncpa [#allocation29], 0
    %s40 = scalar_lea.sflag [#allocation29], 1
    %41 = vsyncpa %s40, 0
    loop: start=0, step=1, limit=8
    $region2: #{tpu_custom_call.1} parent=1 // loop_pre_header
      _
    $region3: #{tpu_custom_call.1} parent=1 // loop_header
      %s43 = sphi 0, %s47
      %p44 = scmp.ge.s32.totalorder %s43, 8
      %s50 = sphi 0, %s62
      %s51 = sphi 0, %s58
      %s52 = sphi 0, %s50
      %s53 = sphi 0, %s51
      %s54 = sphi 0, %s52
      %s55 = sphi 0, %s53
      %s67 = sphi 0, %s69
      %s70 = sphi 0, %s67
      %s71 = sphi 0, %s70
      %s87 = sphi 0, %s71
      %s93 = sphi 0, %s95
      %s96 = sphi 0, %s93
      %s97 = sphi 0, %s96
      %s113 = sphi 0, %s97
      %s119 = sphi 0, %s121
      %s122 = sphi 0, %s119
      %s123 = sphi 0, %s122
      %s139 = sphi 0, %s123
      %s143 = sphi 0, %s143
      %s145 = sphi 0, %s143
      %s146 = sphi 0, %s145
      %s160 = sphi 0, %s146
      %s164 = sphi 0, %s164
      %s166 = sphi 0, %s164
      %s167 = sphi 0, %s166
      %s181 = sphi 0, %s167
      %s185 = sphi 0, %s185
      %s187 = sphi 0, %s185
      %s188 = sphi 0, %s187
      %s202 = sphi 0, %s188
      %s208 = sphi 0, %s210
      %s211 = sphi 0, %s208
      %s212 = sphi 0, %s211
      %s228 = sphi 0, %s212
      %s232 = sphi 0, %s232
      %s234 = sphi 0, %s232
      %s235 = sphi 0, %s234
      %s249 = sphi 0, %s235
      %s253 = sphi 0, %s253
      %s255 = sphi 0, %s253
      %s256 = sphi 0, %s255
      %s270 = sphi 0, %s256
      %s274 = sphi 0, %s274
      %s276 = sphi 0, %s274
      %s277 = sphi 0, %s276
      %s291 = sphi 0, %s277
      %s295 = sphi 0, %s295
      %s297 = sphi 0, %s295
      %s298 = sphi 0, %s297
      %s312 = sphi 0, %s298
      %s316 = sphi 0, %s316
      %s318 = sphi 0, %s316
      %s319 = sphi 0, %s318
      %s333 = sphi 0, %s319
      %s337 = sphi 0, %s337
      %s339 = sphi 0, %s337
      %s340 = sphi 0, %s339
      %s354 = sphi 0, %s340
      %s358 = sphi 0, %s358
      %s360 = sphi 0, %s358
      %s361 = sphi 0, %s360
      %s375 = sphi 0, %s361
      %s379 = sphi 0, %s379
      %s381 = sphi 0, %s379
      %s382 = sphi 0, %s381
      %s396 = sphi 0, %s382
      %s400 = sphi 0, %s400
      %s402 = sphi 0, %s400
      %s403 = sphi 0, %s402
      %s417 = sphi 0, %s403
      %s421 = sphi 0, %s421
      %s423 = sphi 0, %s421
      %s424 = sphi 0, %s423
      %s438 = sphi 0, %s424
      %s442 = sphi 0, %s442
      %s444 = sphi 0, %s442
      %s445 = sphi 0, %s444
      %s459 = sphi 0, %s445
      %s467 = sphi 0, %s469
      %s470 = sphi 0, %s467
      %s471 = sphi 0, %s470
      %s487 = sphi 0, %s471
      %s495 = sphi 0, %s497
      %s498 = sphi 0, %s495
      %s499 = sphi 0, %s498
      %s515 = sphi 0, %s499
      %s521 = sphi 0, %s523
      %s524 = sphi 0, %s521
      %s525 = sphi 0, %s524
      %s541 = sphi 0, %s525
    $region4: #{tpu_custom_call.1} parent=1 // loop_header_branch
      %46 = sbr.rel (%p44) target = $region8
    $region5: #{tpu_custom_call.1} parent=1 // loop_body
      %s48 = ssub.s32 %s43, 1
      %s49 = ssub.s32 %s43, 2
      %s56 = sadd.s32 1, %s51
      %p57 = scmp.ge.s32.totalorder %s56, 6
      %s58 = scalar_select %p57, 0, %s56
      %s59 = sadd.s32 1, %s50
      %s60 = scalar_select %p57, %s59, %s50
      %p61 = scmp.ge.s32.totalorder %s60, 1
      %s62 = scalar_select %p61, 0, %s60
      %s63 = ssub.s32 %s51, %s58
      %s64 = ssub.s32 %s50, %s62
      %s65 = sor.u32 %s63, %s64
      %p66 = scmp.eq.s32.totalorder %s65, 0
      %s68 = sadd.s32 %s67, 1
      %s69 = scalar_select %p66, %s67, %s68
      %p72 = pneg %p66
      %p73 = scmp.eq.s32.totalorder %s43, 5
      %p74 = por %p72, %p73
      %p75 = scmp.ne.s32.totalorder %s67, %s70
      %p76 = scmp.eq.s32.totalorder %s43, 0
      %p77 = por %p75, %p76
      %p78 = scmp.ne.s32.totalorder %s67, %s70
      %p79 = scmp.eq.s32.totalorder %s48, 5
      %p80 = por %p78, %p79
      %p81 = scmp.ne.s32.totalorder %s70, %s71
      %p82 = scmp.eq.s32.totalorder %s48, 0
      %p83 = por %p81, %p82
      %p84 = scmp.ne.s32.totalorder %s70, %s71
      %p85 = scmp.eq.s32.totalorder %s49, 5
      %p86 = por %p84, %p85
      %p88 = scmp.ne.s32.totalorder %s71, %s87
      %p89 = scmp.eq.s32.totalorder %s49, 0
      %p90 = por %p88, %p89
      %s91 = ssub.s32 %s50, %s62
      %p92 = scmp.eq.s32.totalorder %s91, 0
      %s94 = sadd.s32 %s93, 1
      %s95 = scalar_select %p92, %s93, %s94
      %p98 = pneg %p92
      %p99 = scmp.eq.s32.totalorder %s43, 5
      %p100 = por %p98, %p99
      %p101 = scmp.ne.s32.totalorder %s93, %s96
      %p102 = scmp.eq.s32.totalorder %s43, 0
      %p103 = por %p101, %p102
      %p104 = scmp.ne.s32.totalorder %s93, %s96
      %p105 = scmp.eq.s32.totalorder %s48, 5
      %p106 = por %p104, %p105
      %p107 = scmp.ne.s32.totalorder %s96, %s97
      %p108 = scmp.eq.s32.totalorder %s48, 0
      %p109 = por %p107, %p108
      %p110 = scmp.ne.s32.totalorder %s96, %s97
      %p111 = scmp.eq.s32.totalorder %s49, 5
      %p112 = por %p110, %p111
      %p114 = scmp.ne.s32.totalorder %s97, %s113
      %p115 = scmp.eq.s32.totalorder %s49, 0
      %p116 = por %p114, %p115
      %s117 = ssub.s32 %s50, %s62
      %p118 = scmp.eq.s32.totalorder %s117, 0
      %s120 = sadd.s32 %s119, 1
      %s121 = scalar_select %p118, %s119, %s120
      %p124 = pneg %p118
      %p125 = scmp.eq.s32.totalorder %s43, 5
      %p126 = por %p124, %p125
      %p127 = scmp.ne.s32.totalorder %s119, %s122
      %p128 = scmp.eq.s32.totalorder %s43, 0
      %p129 = por %p127, %p128
      %p130 = scmp.ne.s32.totalorder %s119, %s122
      %p131 = scmp.eq.s32.totalorder %s48, 5
      %p132 = por %p130, %p131
      %p133 = scmp.ne.s32.totalorder %s122, %s123
      %p134 = scmp.eq.s32.totalorder %s48, 0
      %p135 = por %p133, %p134
      %p136 = scmp.ne.s32.totalorder %s122, %s123
      %p137 = scmp.eq.s32.totalorder %s49, 5
      %p138 = por %p136, %p137
      %p140 = scmp.ne.s32.totalorder %s123, %s139
      %p141 = scmp.eq.s32.totalorder %s49, 0
      %p142 = por %p140, %p141
      %s144 = sadd.s32 %s143, 1
      %p147 = scmp.eq.s32.totalorder %s43, 5
      %p148 = scmp.ne.s32.totalorder %s143, %s145
      %p149 = scmp.eq.s32.totalorder %s43, 0
      %p150 = por %p148, %p149
      %p151 = scmp.ne.s32.totalorder %s143, %s145
      %p152 = scmp.eq.s32.totalorder %s48, 5
      %p153 = por %p151, %p152
      %p154 = scmp.ne.s32.totalorder %s145, %s146
      %p155 = scmp.eq.s32.totalorder %s48, 0
      %p156 = por %p154, %p155
      %p157 = scmp.ne.s32.totalorder %s145, %s146
      %p158 = scmp.eq.s32.totalorder %s49, 5
      %p159 = por %p157, %p158
      %p161 = scmp.ne.s32.totalorder %s146, %s160
      %p162 = scmp.eq.s32.totalorder %s49, 0
      %p163 = por %p161, %p162
      %s165 = sadd.s32 %s164, 1
      %p168 = scmp.eq.s32.totalorder %s43, 5
      %p169 = scmp.ne.s32.totalorder %s164, %s166
      %p170 = scmp.eq.s32.totalorder %s43, 0
      %p171 = por %p169, %p170
      %p172 = scmp.ne.s32.totalorder %s164, %s166
      %p173 = scmp.eq.s32.totalorder %s48, 5
      %p174 = por %p172, %p173
      %p175 = scmp.ne.s32.totalorder %s166, %s167
      %p176 = scmp.eq.s32.totalorder %s48, 0
      %p177 = por %p175, %p176
      %p178 = scmp.ne.s32.totalorder %s166, %s167
      %p179 = scmp.eq.s32.totalorder %s49, 5
      %p180 = por %p178, %p179
      %p182 = scmp.ne.s32.totalorder %s167, %s181
      %p183 = scmp.eq.s32.totalorder %s49, 0
      %p184 = por %p182, %p183
      %s186 = sadd.s32 %s185, 1
      %p189 = scmp.eq.s32.totalorder %s43, 5
      %p190 = scmp.ne.s32.totalorder %s185, %s187
      %p191 = scmp.eq.s32.totalorder %s43, 0
      %p192 = por %p190, %p191
      %p193 = scmp.ne.s32.totalorder %s185, %s187
      %p194 = scmp.eq.s32.totalorder %s48, 5
      %p195 = por %p193, %p194
      %p196 = scmp.ne.s32.totalorder %s187, %s188
      %p197 = scmp.eq.s32.totalorder %s48, 0
      %p198 = por %p196, %p197
      %p199 = scmp.ne.s32.totalorder %s187, %s188
      %p200 = scmp.eq.s32.totalorder %s49, 5
      %p201 = por %p199, %p200
      %p203 = scmp.ne.s32.totalorder %s188, %s202
      %p204 = scmp.eq.s32.totalorder %s49, 0
      %p205 = por %p203, %p204
      %s206 = ssub.s32 %s50, %s62
      %p207 = scmp.eq.s32.totalorder %s206, 0
      %s209 = sadd.s32 %s208, 1
      %s210 = scalar_select %p207, %s208, %s209
      %p213 = pneg %p207
      %p214 = scmp.eq.s32.totalorder %s43, 5
      %p215 = por %p213, %p214
      %p216 = scmp.ne.s32.totalorder %s208, %s211
      %p217 = scmp.eq.s32.totalorder %s43, 0
      %p218 = por %p216, %p217
      %p219 = scmp.ne.s32.totalorder %s208, %s211
      %p220 = scmp.eq.s32.totalorder %s48, 5
      %p221 = por %p219, %p220
      %p222 = scmp.ne.s32.totalorder %s211, %s212
      %p223 = scmp.eq.s32.totalorder %s48, 0
      %p224 = por %p222, %p223
      %p225 = scmp.ne.s32.totalorder %s211, %s212
      %p226 = scmp.eq.s32.totalorder %s49, 5
      %p227 = por %p225, %p226
      %p229 = scmp.ne.s32.totalorder %s212, %s228
      %p230 = scmp.eq.s32.totalorder %s49, 0
      %p231 = por %p229, %p230
      %s233 = sadd.s32 %s232, 1
      %p236 = scmp.eq.s32.totalorder %s43, 5
      %p237 = scmp.ne.s32.totalorder %s232, %s234
      %p238 = scmp.eq.s32.totalorder %s43, 0
      %p239 = por %p237, %p238
      %p240 = scmp.ne.s32.totalorder %s232, %s234
      %p241 = scmp.eq.s32.totalorder %s48, 5
      %p242 = por %p240, %p241
      %p243 = scmp.ne.s32.totalorder %s234, %s235
      %p244 = scmp.eq.s32.totalorder %s48, 0
      %p245 = por %p243, %p244
      %p246 = scmp.ne.s32.totalorder %s234, %s235
      %p247 = scmp.eq.s32.totalorder %s49, 5
      %p248 = por %p246, %p247
      %p250 = scmp.ne.s32.totalorder %s235, %s249
      %p251 = scmp.eq.s32.totalorder %s49, 0
      %p252 = por %p250, %p251
      %s254 = sadd.s32 %s253, 1
      %p257 = scmp.eq.s32.totalorder %s43, 5
      %p258 = scmp.ne.s32.totalorder %s253, %s255
      %p259 = scmp.eq.s32.totalorder %s43, 0
      %p260 = por %p258, %p259
      %p261 = scmp.ne.s32.totalorder %s253, %s255
      %p262 = scmp.eq.s32.totalorder %s48, 5
      %p263 = por %p261, %p262
      %p264 = scmp.ne.s32.totalorder %s255, %s256
      %p265 = scmp.eq.s32.totalorder %s48, 0
      %p266 = por %p264, %p265
      %p267 = scmp.ne.s32.totalorder %s255, %s256
      %p268 = scmp.eq.s32.totalorder %s49, 5
      %p269 = por %p267, %p268
      %p271 = scmp.ne.s32.totalorder %s256, %s270
      %p272 = scmp.eq.s32.totalorder %s49, 0
      %p273 = por %p271, %p272
      %s275 = sadd.s32 %s274, 1
      %p278 = scmp.eq.s32.totalorder %s43, 5
      %p279 = scmp.ne.s32.totalorder %s274, %s276
      %p280 = scmp.eq.s32.totalorder %s43, 0
      %p281 = por %p279, %p280
      %p282 = scmp.ne.s32.totalorder %s274, %s276
      %p283 = scmp.eq.s32.totalorder %s48, 5
      %p284 = por %p282, %p283
      %p285 = scmp.ne.s32.totalorder %s276, %s277
      %p286 = scmp.eq.s32.totalorder %s48, 0
      %p287 = por %p285, %p286
      %p288 = scmp.ne.s32.totalorder %s276, %s277
      %p289 = scmp.eq.s32.totalorder %s49, 5
      %p290 = por %p288, %p289
      %p292 = scmp.ne.s32.totalorder %s277, %s291
      %p293 = scmp.eq.s32.totalorder %s49, 0
      %p294 = por %p292, %p293
      %s296 = sadd.s32 %s295, 1
      %p299 = scmp.eq.s32.totalorder %s43, 5
      %p300 = scmp.ne.s32.totalorder %s295, %s297
      %p301 = scmp.eq.s32.totalorder %s43, 0
      %p302 = por %p300, %p301
      %p303 = scmp.ne.s32.totalorder %s295, %s297
      %p304 = scmp.eq.s32.totalorder %s48, 5
      %p305 = por %p303, %p304
      %p306 = scmp.ne.s32.totalorder %s297, %s298
      %p307 = scmp.eq.s32.totalorder %s48, 0
      %p308 = por %p306, %p307
      %p309 = scmp.ne.s32.totalorder %s297, %s298
      %p310 = scmp.eq.s32.totalorder %s49, 5
      %p311 = por %p309, %p310
      %p313 = scmp.ne.s32.totalorder %s298, %s312
      %p314 = scmp.eq.s32.totalorder %s49, 0
      %p315 = por %p313, %p314
      %s317 = sadd.s32 %s316, 1
      %p320 = scmp.eq.s32.totalorder %s43, 5
      %p321 = scmp.ne.s32.totalorder %s316, %s318
      %p322 = scmp.eq.s32.totalorder %s43, 0
      %p323 = por %p321, %p322
      %p324 = scmp.ne.s32.totalorder %s316, %s318
      %p325 = scmp.eq.s32.totalorder %s48, 5
      %p326 = por %p324, %p325
      %p327 = scmp.ne.s32.totalorder %s318, %s319
      %p328 = scmp.eq.s32.totalorder %s48, 0
      %p329 = por %p327, %p328
      %p330 = scmp.ne.s32.totalorder %s318, %s319
      %p331 = scmp.eq.s32.totalorder %s49, 5
      %p332 = por %p330, %p331
      %p334 = scmp.ne.s32.totalorder %s319, %s333
      %p335 = scmp.eq.s32.totalorder %s49, 0
      %p336 = por %p334, %p335
      %s338 = sadd.s32 %s337, 1
      %p341 = scmp.eq.s32.totalorder %s43, 5
      %p342 = scmp.ne.s32.totalorder %s337, %s339
      %p343 = scmp.eq.s32.totalorder %s43, 0
      %p344 = por %p342, %p343
      %p345 = scmp.ne.s32.totalorder %s337, %s339
      %p346 = scmp.eq.s32.totalorder %s48, 5
      %p347 = por %p345, %p346
      %p348 = scmp.ne.s32.totalorder %s339, %s340
      %p349 = scmp.eq.s32.totalorder %s48, 0
      %p350 = por %p348, %p349
      %p351 = scmp.ne.s32.totalorder %s339, %s340
      %p352 = scmp.eq.s32.totalorder %s49, 5
      %p353 = por %p351, %p352
      %p355 = scmp.ne.s32.totalorder %s340, %s354
      %p356 = scmp.eq.s32.totalorder %s49, 0
      %p357 = por %p355, %p356
      %s359 = sadd.s32 %s358, 1
      %p362 = scmp.eq.s32.totalorder %s43, 5
      %p363 = scmp.ne.s32.totalorder %s358, %s360
      %p364 = scmp.eq.s32.totalorder %s43, 0
      %p365 = por %p363, %p364
      %p366 = scmp.ne.s32.totalorder %s358, %s360
      %p367 = scmp.eq.s32.totalorder %s48, 5
      %p368 = por %p366, %p367
      %p369 = scmp.ne.s32.totalorder %s360, %s361
      %p370 = scmp.eq.s32.totalorder %s48, 0
      %p371 = por %p369, %p370
      %p372 = scmp.ne.s32.totalorder %s360, %s361
      %p373 = scmp.eq.s32.totalorder %s49, 5
      %p374 = por %p372, %p373
      %p376 = scmp.ne.s32.totalorder %s361, %s375
      %p377 = scmp.eq.s32.totalorder %s49, 0
      %p378 = por %p376, %p377
      %s380 = sadd.s32 %s379, 1
      %p383 = scmp.eq.s32.totalorder %s43, 5
      %p384 = scmp.ne.s32.totalorder %s379, %s381
      %p385 = scmp.eq.s32.totalorder %s43, 0
      %p386 = por %p384, %p385
      %p387 = scmp.ne.s32.totalorder %s379, %s381
      %p388 = scmp.eq.s32.totalorder %s48, 5
      %p389 = por %p387, %p388
      %p390 = scmp.ne.s32.totalorder %s381, %s382
      %p391 = scmp.eq.s32.totalorder %s48, 0
      %p392 = por %p390, %p391
      %p393 = scmp.ne.s32.totalorder %s381, %s382
      %p394 = scmp.eq.s32.totalorder %s49, 5
      %p395 = por %p393, %p394
      %p397 = scmp.ne.s32.totalorder %s382, %s396
      %p398 = scmp.eq.s32.totalorder %s49, 0
      %p399 = por %p397, %p398
      %s401 = sadd.s32 %s400, 1
      %p404 = scmp.eq.s32.totalorder %s43, 5
      %p405 = scmp.ne.s32.totalorder %s400, %s402
      %p406 = scmp.eq.s32.totalorder %s43, 0
      %p407 = por %p405, %p406
      %p408 = scmp.ne.s32.totalorder %s400, %s402
      %p409 = scmp.eq.s32.totalorder %s48, 5
      %p410 = por %p408, %p409
      %p411 = scmp.ne.s32.totalorder %s402, %s403
      %p412 = scmp.eq.s32.totalorder %s48, 0
      %p413 = por %p411, %p412
      %p414 = scmp.ne.s32.totalorder %s402, %s403
      %p415 = scmp.eq.s32.totalorder %s49, 5
      %p416 = por %p414, %p415
      %p418 = scmp.ne.s32.totalorder %s403, %s417
      %p419 = scmp.eq.s32.totalorder %s49, 0
      %p420 = por %p418, %p419
      %s422 = sadd.s32 %s421, 1
      %p425 = scmp.eq.s32.totalorder %s43, 5
      %p426 = scmp.ne.s32.totalorder %s421, %s423
      %p427 = scmp.eq.s32.totalorder %s43, 0
      %p428 = por %p426, %p427
      %p429 = scmp.ne.s32.totalorder %s421, %s423
      %p430 = scmp.eq.s32.totalorder %s48, 5
      %p431 = por %p429, %p430
      %p432 = scmp.ne.s32.totalorder %s423, %s424
      %p433 = scmp.eq.s32.totalorder %s48, 0
      %p434 = por %p432, %p433
      %p435 = scmp.ne.s32.totalorder %s423, %s424
      %p436 = scmp.eq.s32.totalorder %s49, 5
      %p437 = por %p435, %p436
      %p439 = scmp.ne.s32.totalorder %s424, %s438
      %p440 = scmp.eq.s32.totalorder %s49, 0
      %p441 = por %p439, %p440
      %s443 = sadd.s32 %s442, 1
      %p446 = scmp.eq.s32.totalorder %s43, 5
      %p447 = scmp.ne.s32.totalorder %s442, %s444
      %p448 = scmp.eq.s32.totalorder %s43, 0
      %p449 = por %p447, %p448
      %p450 = scmp.ne.s32.totalorder %s442, %s444
      %p451 = scmp.eq.s32.totalorder %s48, 5
      %p452 = por %p450, %p451
      %p453 = scmp.ne.s32.totalorder %s444, %s445
      %p454 = scmp.eq.s32.totalorder %s48, 0
      %p455 = por %p453, %p454
      %p456 = scmp.ne.s32.totalorder %s444, %s445
      %p457 = scmp.eq.s32.totalorder %s49, 5
      %p458 = por %p456, %p457
      %p460 = scmp.ne.s32.totalorder %s445, %s459
      %p461 = scmp.eq.s32.totalorder %s49, 0
      %p462 = por %p460, %p461
      %s463 = ssub.s32 %s51, %s58
      %s464 = ssub.s32 %s50, %s62
      %s465 = sor.u32 %s463, %s464
      %p466 = scmp.eq.s32.totalorder %s465, 0
      %s468 = sadd.s32 %s467, 1
      %s469 = scalar_select %p466, %s467, %s468
      %p472 = pneg %p466
      %p473 = scmp.eq.s32.totalorder %s43, 5
      %p474 = por %p472, %p473
      %p475 = scmp.ne.s32.totalorder %s467, %s470
      %p476 = scmp.eq.s32.totalorder %s43, 0
      %p477 = por %p475, %p476
      %p478 = scmp.ne.s32.totalorder %s467, %s470
      %p479 = scmp.eq.s32.totalorder %s48, 5
      %p480 = por %p478, %p479
      %p481 = scmp.ne.s32.totalorder %s470, %s471
      %p482 = scmp.eq.s32.totalorder %s48, 0
      %p483 = por %p481, %p482
      %p484 = scmp.ne.s32.totalorder %s470, %s471
      %p485 = scmp.eq.s32.totalorder %s49, 5
      %p486 = por %p484, %p485
      %p488 = scmp.ne.s32.totalorder %s471, %s487
      %p489 = scmp.eq.s32.totalorder %s49, 0
      %p490 = por %p488, %p489
      %s491 = ssub.s32 %s51, %s58
      %s492 = ssub.s32 %s50, %s62
      %s493 = sor.u32 %s491, %s492
      %p494 = scmp.eq.s32.totalorder %s493, 0
      %s496 = sadd.s32 %s495, 1
      %s497 = scalar_select %p494, %s495, %s496
      %p500 = pneg %p494
      %p501 = scmp.eq.s32.totalorder %s43, 5
      %p502 = por %p500, %p501
      %p503 = scmp.ne.s32.totalorder %s495, %s498
      %p504 = scmp.eq.s32.totalorder %s43, 0
      %p505 = por %p503, %p504
      %p506 = scmp.ne.s32.totalorder %s495, %s498
      %p507 = scmp.eq.s32.totalorder %s48, 5
      %p508 = por %p506, %p507
      %p509 = scmp.ne.s32.totalorder %s498, %s499
      %p510 = scmp.eq.s32.totalorder %s48, 0
      %p511 = por %p509, %p510
      %p512 = scmp.ne.s32.totalorder %s498, %s499
      %p513 = scmp.eq.s32.totalorder %s49, 5
      %p514 = por %p512, %p513
      %p516 = scmp.ne.s32.totalorder %s499, %s515
      %p517 = scmp.eq.s32.totalorder %s49, 0
      %p518 = por %p516, %p517
      %s519 = ssub.s32 %s50, %s62
      %p520 = scmp.eq.s32.totalorder %s519, 0
      %s522 = sadd.s32 %s521, 1
      %s523 = scalar_select %p520, %s521, %s522
      %p526 = pneg %p520
      %p527 = scmp.eq.s32.totalorder %s43, 5
      %p528 = por %p526, %p527
      %p529 = scmp.ne.s32.totalorder %s521, %s524
      %p530 = scmp.eq.s32.totalorder %s43, 0
      %p531 = por %p529, %p530
      %p532 = scmp.ne.s32.totalorder %s521, %s524
      %p533 = scmp.eq.s32.totalorder %s48, 5
      %p534 = por %p532, %p533
      %p535 = scmp.ne.s32.totalorder %s524, %s525
      %p536 = scmp.eq.s32.totalorder %s48, 0
      %p537 = por %p535, %p536
      %p538 = scmp.ne.s32.totalorder %s524, %s525
      %p539 = scmp.eq.s32.totalorder %s49, 5
      %p540 = por %p538, %p539
      %p542 = scmp.ne.s32.totalorder %s525, %s541
      %p543 = scmp.eq.s32.totalorder %s49, 0
      %p544 = por %p542, %p543
      %p545 = scmp.le.s32.totalorder 1, %s43
      %p546 = scmp.lt.s32.totalorder %s43, 7
      %p547 = pnand %p545, %p546
      %p548 = pneg %p547
      // Predicated region
      $region9: #{tpu_custom_call.1} parent=5 // pred_check
        _
      $region10: #{tpu_custom_call.1} parent=5 // pred_check_branch
        %550 = sbr.rel (%p547) target = $region12
      $region11: #{tpu_custom_call.1} parent=5 // pred_region
        %s551 = ssub.s32 %s43, 1
        // Predicated region
        $region13: #{tpu_custom_call.1} parent=11 // pred_check
          %p552 = pneg %p109
        $region14: #{tpu_custom_call.1} parent=11 // pred_check_branch
          %554 = sbr.rel (%p552) target = $region16
        $region15: #{tpu_custom_call.1} parent=11 // pred_region
          %s555 = smul.u32 2, %s52
          %s557 = ssub.s32 256, 256
          %558 = vsyncadd [#allocation8], %s557
          %s559 = smul.addr %s555, 128
          %s560 = scalar_lea.hbm %s1, %s559
          %s561 = sshll.u32 [#allocation7], 4
          %s562 = int_to_ptr.vmem [resolvable:$true] %s561
          %567 = dma.hbm_to_vmem [thread:$0]  %s560, 256, %s562, [#allocation8], 128, 128, 8
        $region16: #{tpu_custom_call.1} parent=11 // pred_fallthru
          _
        // Predicated region
        $region17: #{tpu_custom_call.1} parent=11 // pred_check
          %p568 = pneg %p135
        $region18: #{tpu_custom_call.1} parent=11 // pred_check_branch
          %570 = sbr.rel (%p568) target = $region20
        $region19: #{tpu_custom_call.1} parent=11 // pred_region
          %p571 = scmp.lt.s32.totalorder %s52, 0
          %s572 = scalar_select %p571, %s52, 0
          %s573 = smul.addr %s572, 2
          %s574 = scalar_lea.vmem %s2, %s573
        $region20: #{tpu_custom_call.1} parent=11 // pred_fallthru
          _
        // Predicated region
        $region21: #{tpu_custom_call.1} parent=11 // pred_check
          %p575 = pneg %p156
        $region22: #{tpu_custom_call.1} parent=11 // pred_check_branch
          %577 = sbr.rel (%p575) target = $region24
        $region23: #{tpu_custom_call.1} parent=11 // pred_region
          %s579 = ssub.s32 512, 512
          %580 = vsyncadd [#allocation8], %s579
          %s581 = sshll.u32 [#allocation9], 4
          %s582 = int_to_ptr.vmem [resolvable:$true] %s581
          %587 = dma.hbm_to_vmem [thread:$0]  %s3, 512, %s582, [#allocation8], 128, 128, 8
        $region24: #{tpu_custom_call.1} parent=11 // pred_fallthru
          _
        // Predicated region
        $region25: #{tpu_custom_call.1} parent=11 // pred_check
          %p588 = pneg %p177
        $region26: #{tpu_custom_call.1} parent=11 // pred_check_branch
          %590 = sbr.rel (%p588) target = $region28
        $region27: #{tpu_custom_call.1} parent=11 // pred_region
          %s592 = ssub.s32 512, 512
          %593 = vsyncadd [#allocation11], %s592
          %s594 = sshll.u32 [#allocation10], 4
          %s595 = int_to_ptr.vmem [resolvable:$true] %s594
          %600 = dma.hbm_to_vmem [thread:$0]  %s4, 512, %s595, [#allocation11], 128, 128, 8
        $region28: #{tpu_custom_call.1} parent=11 // pred_fallthru
          _
        // Predicated region
        $region29: #{tpu_custom_call.1} parent=11 // pred_check
          %p601 = pneg %p198
        $region30: #{tpu_custom_call.1} parent=11 // pred_check_branch
          %603 = sbr.rel (%p601) target = $region32
        $region31: #{tpu_custom_call.1} parent=11 // pred_region
          %s605 = ssub.s32 16, 16
          %606 = vsyncadd [#allocation11], %s605
          %s608 = sshll.u32 [#allocation12], 4
          %s609 = int_to_ptr.vmem [resolvable:$true] %s608
          %611 = dma.hbm_to_vmem [thread:$0]  %s5, 16, %s609, [#allocation11]
        $region32: #{tpu_custom_call.1} parent=11 // pred_fallthru
          _
        // Predicated region
        $region33: #{tpu_custom_call.1} parent=11 // pred_check
          %p612 = pneg %p224
        $region34: #{tpu_custom_call.1} parent=11 // pred_check_branch
          %614 = sbr.rel (%p612) target = $region36
        $region35: #{tpu_custom_call.1} parent=11 // pred_region
          %s616 = ssub.s32 64, 64
          %617 = vsyncadd [#allocation14], %s616
          %s618 = smul.addr %s52, 32
          %s619 = scalar_lea.hbm %s6, %s618
          %s620 = sshll.u32 [#allocation13], 4
          %s621 = int_to_ptr.vmem [resolvable:$true] %s620
          %626 = dma.hbm_to_vmem [thread:$0]  %s619, 64, %s621, [#allocation14], 32, 32, 2
        $region36: #{tpu_custom_call.1} parent=11 // pred_fallthru
          _
        // Predicated region
        $region37: #{tpu_custom_call.1} parent=11 // pred_check
          %p627 = pneg %p245
        $region38: #{tpu_custom_call.1} parent=11 // pred_check_branch
          %629 = sbr.rel (%p627) target = $region40
        $region39: #{tpu_custom_call.1} parent=11 // pred_region
          %s631 = ssub.s32 512, 512
          %632 = vsyncadd [#allocation14], %s631
          %s633 = sshll.u32 [#allocation15], 4
          %s634 = int_to_ptr.vmem [resolvable:$true] %s633
          %639 = dma.hbm_to_vmem [thread:$0]  %s7, 512, %s634, [#allocation14], 128, 128, 8
        $region40: #{tpu_custom_call.1} parent=11 // pred_fallthru
          _
        // Predicated region
        $region41: #{tpu_custom_call.1} parent=11 // pred_check
          %p640 = pneg %p266
        $region42: #{tpu_custom_call.1} parent=11 // pred_check_branch
          %642 = sbr.rel (%p640) target = $region44
        $region43: #{tpu_custom_call.1} parent=11 // pred_region
          %s644 = ssub.s32 256, 256
          %645 = vsyncadd [#allocation17], %s644
          %s646 = sshll.u32 [#allocation16], 4
          %s647 = int_to_ptr.vmem [resolvable:$true] %s646
          %652 = dma.hbm_to_vmem [thread:$0]  %s8, 256, %s647, [#allocation17], 128, 128, 8
        $region44: #{tpu_custom_call.1} parent=11 // pred_fallthru
          _
        // Predicated region
        $region45: #{tpu_custom_call.1} parent=11 // pred_check
          %p653 = pneg %p287
        $region46: #{tpu_custom_call.1} parent=11 // pred_check_branch
          %655 = sbr.rel (%p653) target = $region48
        $region47: #{tpu_custom_call.1} parent=11 // pred_region
          _
        $region48: #{tpu_custom_call.1} parent=11 // pred_fallthru
          _
        // Predicated region
        $region49: #{tpu_custom_call.1} parent=11 // pred_check
          %p656 = pneg %p308
        $region50: #{tpu_custom_call.1} parent=11 // pred_check_branch
          %658 = sbr.rel (%p656) target = $region52
        $region51: #{tpu_custom_call.1} parent=11 // pred_region
          %s660 = ssub.s32 16, 16
          %661 = vsyncadd [#allocation17], %s660
          %s663 = sshll.u32 [#allocation18], 4
          %s664 = int_to_ptr.vmem [resolvable:$true] %s663
          %666 = dma.hbm_to_vmem [thread:$0]  %s10, 16, %s664, [#allocation17]
        $region52: #{tpu_custom_call.1} parent=11 // pred_fallthru
          _
        // Predicated region
        $region53: #{tpu_custom_call.1} parent=11 // pred_check
          %p667 = pneg %p329
        $region54: #{tpu_custom_call.1} parent=11 // pred_check_branch
          %669 = sbr.rel (%p667) target = $region56
        $region55: #{tpu_custom_call.1} parent=11 // pred_region
          %s671 = ssub.s32 16, 16
          %672 = vsyncadd [#allocation20], %s671
          %s674 = sshll.u32 [#allocation19], 4
          %s675 = int_to_ptr.vmem [resolvable:$true] %s674
          %677 = dma.hbm_to_vmem [thread:$0]  %s11, 16, %s675, [#allocation20]
        $region56: #{tpu_custom_call.1} parent=11 // pred_fallthru
          _
        // Predicated region
        $region57: #{tpu_custom_call.1} parent=11 // pred_check
          %p678 = pneg %p350
        $region58: #{tpu_custom_call.1} parent=11 // pred_check_branch
          %680 = sbr.rel (%p678) target = $region60
        $region59: #{tpu_custom_call.1} parent=11 // pred_region
          %s682 = ssub.s32 512, 512
          %683 = vsyncadd [#allocation20], %s682
          %s684 = sshll.u32 [#allocation21], 4
          %s685 = int_to_ptr.vmem [resolvable:$true] %s684
          %690 = dma.hbm_to_vmem [thread:$0]  %s12, 512, %s685, [#allocation20], 128, 128, 8
        $region60: #{tpu_custom_call.1} parent=11 // pred_fallthru
          _
        // Predicated region
        $region61: #{tpu_custom_call.1} parent=11 // pred_check
          %p691 = pneg %p371
        $region62: #{tpu_custom_call.1} parent=11 // pred_check_branch
          %693 = sbr.rel (%p691) target = $region64
        $region63: #{tpu_custom_call.1} parent=11 // pred_region
          %s695 = ssub.s32 512, 512
          %696 = vsyncadd [#allocation23], %s695
          %s697 = sshll.u32 [#allocation22], 4
          %s698 = int_to_ptr.vmem [resolvable:$true] %s697
          %703 = dma.hbm_to_vmem [thread:$0]  %s13, 512, %s698, [#allocation23], 128, 128, 8
        $region64: #{tpu_custom_call.1} parent=11 // pred_fallthru
          _
        // Predicated region
        $region65: #{tpu_custom_call.1} parent=11 // pred_check
          %p704 = pneg %p392
        $region66: #{tpu_custom_call.1} parent=11 // pred_check_branch
          %706 = sbr.rel (%p704) target = $region68
        $region67: #{tpu_custom_call.1} parent=11 // pred_region
          %s708 = ssub.s32 16, 16
          %709 = vsyncadd [#allocation23], %s708
          %s711 = sshll.u32 [#allocation24], 4
          %s712 = int_to_ptr.vmem [resolvable:$true] %s711
          %714 = dma.hbm_to_vmem [thread:$0]  %s14, 16, %s712, [#allocation23]
        $region68: #{tpu_custom_call.1} parent=11 // pred_fallthru
          _
        // Predicated region
        $region69: #{tpu_custom_call.1} parent=11 // pred_check
          %p715 = pneg %p413
        $region70: #{tpu_custom_call.1} parent=11 // pred_check_branch
          %717 = sbr.rel (%p715) target = $region72
        $region71: #{tpu_custom_call.1} parent=11 // pred_region
          %s719 = ssub.s32 16, 16
          %720 = vsyncadd [#allocation26], %s719
          %s722 = sshll.u32 [#allocation25], 4
          %s723 = int_to_ptr.vmem [resolvable:$true] %s722
          %725 = dma.hbm_to_vmem [thread:$0]  %s15, 16, %s723, [#allocation26]
        $region72: #{tpu_custom_call.1} parent=11 // pred_fallthru
          _
        // Predicated region
        $region73: #{tpu_custom_call.1} parent=11 // pred_check
          %p726 = pneg %p434
        $region74: #{tpu_custom_call.1} parent=11 // pred_check_branch
          %728 = sbr.rel (%p726) target = $region76
        $region75: #{tpu_custom_call.1} parent=11 // pred_region
          _
        $region76: #{tpu_custom_call.1} parent=11 // pred_fallthru
          _
        // Predicated region
        $region77: #{tpu_custom_call.1} parent=11 // pred_check
          %p729 = pneg %p455
        $region78: #{tpu_custom_call.1} parent=11 // pred_check_branch
          %731 = sbr.rel (%p729) target = $region80
        $region79: #{tpu_custom_call.1} parent=11 // pred_region
          _
        $region80: #{tpu_custom_call.1} parent=11 // pred_fallthru
          _
      $region12: #{tpu_custom_call.1} parent=5 // pred_fallthru
        _
      %p732 = scmp.lt.s32.totalorder %s43, 6
      // Predicated region
      $region81: #{tpu_custom_call.1} parent=5 // pred_check
        %p733 = pneg %p732
      $region82: #{tpu_custom_call.1} parent=5 // pred_check_branch
        %735 = sbr.rel (%p733) target = $region84
      $region83: #{tpu_custom_call.1} parent=5 // pred_region
        // Predicated region
        $region85: #{tpu_custom_call.1} parent=83 // pred_check
          %p736 = pneg %p77
        $region86: #{tpu_custom_call.1} parent=83 // pred_check_branch
          %738 = sbr.rel (%p736) target = $region88
        $region87: #{tpu_custom_call.1} parent=83 // pred_region
          %s739 = sand.u32 %s67, 1
          %s740 = scalar_lea.sflag [#allocation5], %s739
          %s741 = sand.u32 %s67, 1
          %s742 = smul.addr %s741, 2
          %s743 = scalar_lea.vmem [#allocation4], %s742
          %s745 = ssub.s32 32, 32
          %746 = vsyncadd %s740, %s745
          %s747 = sadd.s32 %s50, %s51
          %s748 = smul.addr %s747, 32
          %s749 = scalar_lea.hbm %s0, %s748
          %s751 = sshll.u32 %s743, 4
          %s752 = int_to_ptr.vmem [resolvable:$true] %s751
          %754 = dma.hbm_to_vmem [thread:$0]  %s749, 32, %s752, %s740
        $region88: #{tpu_custom_call.1} parent=83 // pred_fallthru
          _
      $region84: #{tpu_custom_call.1} parent=5 // pred_fallthru
        _
      %p755 = scmp.le.s32.totalorder 1, %s43
      %p756 = scmp.lt.s32.totalorder %s43, 7
      %p757 = pnand %p755, %p756
      %p758 = pneg %p757
      // Predicated region
      $region89: #{tpu_custom_call.1} parent=5 // pred_check
        _
      $region90: #{tpu_custom_call.1} parent=5 // pred_check_branch
        %760 = sbr.rel (%p757) target = $region92
      $region91: #{tpu_custom_call.1} parent=5 // pred_region
        %s761 = ssub.s32 %s43, 1
        %s762 = sand.u32 %s70, 1
        %s763 = scalar_lea.sflag [#allocation5], %s762
        %s764 = sand.u32 %s70, 1
        %s765 = smul.addr %s764, 2
        %s766 = scalar_lea.vmem [#allocation4], %s765
        // Predicated region
        $region93: #{tpu_custom_call.1} parent=91 // pred_check
          %p767 = pneg %p83
        $region94: #{tpu_custom_call.1} parent=91 // pred_check_branch
          %769 = sbr.rel (%p767) target = $region96
        $region95: #{tpu_custom_call.1} parent=91 // pred_region
          %770 = dma.done %s763, 32
        $region96: #{tpu_custom_call.1} parent=91 // pred_fallthru
          _
        // Predicated region
        $region97: #{tpu_custom_call.1} parent=91 // pred_check
          %p771 = pneg %p109
        $region98: #{tpu_custom_call.1} parent=91 // pred_check_branch
          %773 = sbr.rel (%p771) target = $region100
        $region99: #{tpu_custom_call.1} parent=91 // pred_region
          %774 = dma.done [#allocation8], 256
        $region100: #{tpu_custom_call.1} parent=91 // pred_fallthru
          _
        // Predicated region
        $region101: #{tpu_custom_call.1} parent=91 // pred_check
          %p775 = pneg %p156
        $region102: #{tpu_custom_call.1} parent=91 // pred_check_branch
          %777 = sbr.rel (%p775) target = $region104
        $region103: #{tpu_custom_call.1} parent=91 // pred_region
          %778 = dma.done [#allocation8], 512
        $region104: #{tpu_custom_call.1} parent=91 // pred_fallthru
          _
        // Predicated region
        $region105: #{tpu_custom_call.1} parent=91 // pred_check
          %p779 = pneg %p177
        $region106: #{tpu_custom_call.1} parent=91 // pred_check_branch
          %781 = sbr.rel (%p779) target = $region108
        $region107: #{tpu_custom_call.1} parent=91 // pred_region
          %782 = dma.done [#allocation11], 512
        $region108: #{tpu_custom_call.1} parent=91 // pred_fallthru
          _
        // Predicated region
        $region109: #{tpu_custom_call.1} parent=91 // pred_check
          %p783 = pneg %p198
        $region110: #{tpu_custom_call.1} parent=91 // pred_check_branch
          %785 = sbr.rel (%p783) target = $region112
        $region111: #{tpu_custom_call.1} parent=91 // pred_region
          %786 = dma.done [#allocation11], 16
        $region112: #{tpu_custom_call.1} parent=91 // pred_fallthru
          _
        // Predicated region
        $region113: #{tpu_custom_call.1} parent=91 // pred_check
          %p787 = pneg %p224
        $region114: #{tpu_custom_call.1} parent=91 // pred_check_branch
          %789 = sbr.rel (%p787) target = $region116
        $region115: #{tpu_custom_call.1} parent=91 // pred_region
          %790 = dma.done [#allocation14], 64
        $region116: #{tpu_custom_call.1} parent=91 // pred_fallthru
          _
        // Predicated region
        $region117: #{tpu_custom_call.1} parent=91 // pred_check
          %p791 = pneg %p245
        $region118: #{tpu_custom_call.1} parent=91 // pred_check_branch
          %793 = sbr.rel (%p791) target = $region120
        $region119: #{tpu_custom_call.1} parent=91 // pred_region
          %794 = dma.done [#allocation14], 512
        $region120: #{tpu_custom_call.1} parent=91 // pred_fallthru
          _
        // Predicated region
        $region121: #{tpu_custom_call.1} parent=91 // pred_check
          %p795 = pneg %p266
        $region122: #{tpu_custom_call.1} parent=91 // pred_check_branch
          %797 = sbr.rel (%p795) target = $region124
        $region123: #{tpu_custom_call.1} parent=91 // pred_region
          %798 = dma.done [#allocation17], 256
        $region124: #{tpu_custom_call.1} parent=91 // pred_fallthru
          _
        // Predicated region
        $region125: #{tpu_custom_call.1} parent=91 // pred_check
          %p799 = pneg %p308
        $region126: #{tpu_custom_call.1} parent=91 // pred_check_branch
          %801 = sbr.rel (%p799) target = $region128
        $region127: #{tpu_custom_call.1} parent=91 // pred_region
          %802 = dma.done [#allocation17], 16
        $region128: #{tpu_custom_call.1} parent=91 // pred_fallthru
          _
        // Predicated region
        $region129: #{tpu_custom_call.1} parent=91 // pred_check
          %p803 = pneg %p329
        $region130: #{tpu_custom_call.1} parent=91 // pred_check_branch
          %805 = sbr.rel (%p803) target = $region132
        $region131: #{tpu_custom_call.1} parent=91 // pred_region
          %806 = dma.done [#allocation20], 16
        $region132: #{tpu_custom_call.1} parent=91 // pred_fallthru
          _
        // Predicated region
        $region133: #{tpu_custom_call.1} parent=91 // pred_check
          %p807 = pneg %p350
        $region134: #{tpu_custom_call.1} parent=91 // pred_check_branch
          %809 = sbr.rel (%p807) target = $region136
        $region135: #{tpu_custom_call.1} parent=91 // pred_region
          %810 = dma.done [#allocation20], 512
        $region136: #{tpu_custom_call.1} parent=91 // pred_fallthru
          _
        // Predicated region
        $region137: #{tpu_custom_call.1} parent=91 // pred_check
          %p811 = pneg %p371
        $region138: #{tpu_custom_call.1} parent=91 // pred_check_branch
          %813 = sbr.rel (%p811) target = $region140
        $region139: #{tpu_custom_call.1} parent=91 // pred_region
          %814 = dma.done [#allocation23], 512
        $region140: #{tpu_custom_call.1} parent=91 // pred_fallthru
          _
        // Predicated region
        $region141: #{tpu_custom_call.1} parent=91 // pred_check
          %p815 = pneg %p392
        $region142: #{tpu_custom_call.1} parent=91 // pred_check_branch
          %817 = sbr.rel (%p815) target = $region144
        $region143: #{tpu_custom_call.1} parent=91 // pred_region
          %818 = dma.done [#allocation23], 16
        $region144: #{tpu_custom_call.1} parent=91 // pred_fallthru
          _
        // Predicated region
        $region145: #{tpu_custom_call.1} parent=91 // pred_check
          %p819 = pneg %p413
        $region146: #{tpu_custom_call.1} parent=91 // pred_check_branch
          %821 = sbr.rel (%p819) target = $region148
        $region147: #{tpu_custom_call.1} parent=91 // pred_region
          %822 = dma.done [#allocation26], 16
        $region148: #{tpu_custom_call.1} parent=91 // pred_fallthru
          _
        %s823 = sand.u32 %s70, 1
        %s824 = scalar_lea.sflag [#allocation5], %s823
        %s825 = sand.u32 %s70, 1
        %s826 = smul.addr %s825, 2
        %s827 = scalar_lea.vmem [#allocation4], %s826
        %p828 = pneg %p83
        %p829 = pneg %p80
        %p830 = pneg %p109
        %p831 = pneg %p106
        %p832 = scmp.lt.s32.totalorder %s52, 0
        %s833 = scalar_select %p832, %s52, 0
        %s834 = smul.addr %s833, 2
        %s835 = scalar_lea.vmem %s2, %s834
        %p836 = pneg %p135
        %p837 = pneg %p132
        %p838 = pneg %p156
        %p839 = pneg %p153
        %p840 = pneg %p177
        %p841 = pneg %p174
        %p842 = pneg %p198
        %p843 = pneg %p195
        %p844 = pneg %p224
        %p845 = pneg %p221
        %p846 = pneg %p245
        %p847 = pneg %p242
        %p848 = pneg %p266
        %p849 = pneg %p263
        %p850 = pneg %p287
        %p851 = pneg %p284
        %p852 = pneg %p308
        %p853 = pneg %p305
        %p854 = pneg %p329
        %p855 = pneg %p326
        %p856 = pneg %p350
        %p857 = pneg %p347
        %p858 = pneg %p371
        %p859 = pneg %p368
        %p860 = pneg %p392
        %p861 = pneg %p389
        %p862 = pneg %p413
        %p863 = pneg %p410
        %p864 = pneg %p434
        %p865 = pneg %p431
        %p866 = pneg %p455
        %p867 = pneg %p452
        %p868 = pneg %p483
        %p869 = pneg %p480
        %s870 = sand.u32 %s470, 1
        %s871 = scalar_lea.sflag [#allocation6], %s870
        %s872 = sand.u32 %s470, 1
        %s873 = smul.addr %s872, 2
        %s874 = scalar_lea.vmem [#allocation27], %s873
        %p875 = pneg %p511
        %p876 = pneg %p508
        %s877 = sand.u32 %s48, 1
        %s878 = scalar_lea.sflag [#allocation29], %s877
        %s879 = sand.u32 %s498, 1
        %s880 = smul.addr %s879, 2
        %s881 = scalar_lea.vmem [#allocation28], %s880
        %p882 = pneg %p537
        %p883 = pneg %p534
        %s884 = smul.u32 2, %s52
        %p885 = scmp.lt.s32.totalorder %s52, 0
        %s886 = scalar_select %p885, %s52, 0
        %s887 = smul.addr %s886, 2
        %s888 = scalar_lea.vmem %s2, %s887
        %p889 = scmp.eq.s32.totalorder %s53, 0
        // Predicated region
        $region149: #{tpu_custom_call.1} parent=91 // pred_check
          %p890 = pneg %p889
        $region150: #{tpu_custom_call.1} parent=91 // pred_check_branch
          %892 = sbr.rel (%p890) target = $region152
        $region151: #{tpu_custom_call.1} parent=91 // pred_region
          %v893 = vld [vmem:[#allocation7] sm:$0xff]
          %v894 = vld [vmem:[#allocation7 + $0x8] sm:$0xff]
          %v895 = vld [vmem:[#allocation10] sm:$0xff]
          %v896 = vld [vmem:[#allocation10 + $0x8] sm:$0xff]
          %v897 = vld [vmem:[#allocation10 + $0x10] sm:$0xff]
          %v898 = vld [vmem:[#allocation10 + $0x18] sm:$0xff]
          %vm899 = vcmask 261120
          %v901 = vsel %vm899, %v893, 0
          %v904 = vsel %vm899, %v894, 0
          %906 = vmatprep.subr.mxu0 0.0
          %907 = vmatpush1.msra.mxu0 %v895
          %908 = vmatprep.subr.mxu0 0.0
          %909 = vmatpush1.msra.mxu0 %v896
          %910 = vmatprep.subr.mxu0 0.0
          %911 = vmatpush1.msra.mxu0 %v897
          %912 = vmatprep.subr.mxu0 0.0
          %913 = vmatpush1.msra.mxu0 %v898
          %914 = vmatprep.subr.mxu0 0.0
          %915 = vmatpush1.msra.mxu0 0.0
          %916 = vmatprep.subr.mxu0 0.0
          %917 = vmatpush1.msra.mxu0 0.0
          %918 = vmatprep.subr.mxu0 0.0
          %919 = vmatpush1.msra.mxu0 0.0
          %920 = vmatprep.subr.mxu0 0.0
          %921 = vmatpush1.msra.mxu0 0.0
          %922 = vmatprep.subr.mxu0 0.0
          %923 = vmatpush1.msra.mxu0 0.0
          %924 = vmatprep.subr.mxu0 0.0
          %925 = vmatpush1.msra.mxu0 0.0
          %926 = vmatprep.subr.mxu0 0.0
          %927 = vmatpush1.msra.mxu0 0.0
          %928 = vmatprep.subr.mxu0 0.0
          %929 = vmatpush1.msra.mxu0 0.0
          %930 = vmatprep.subr.mxu0 0.0
          %931 = vmatpush1.msra.mxu0 0.0
          %932 = vmatprep.subr.mxu0 0.0
          %933 = vmatpush1.msra.mxu0 0.0
          %934 = vmatprep.subr.mxu0 0.0
          %935 = vmatpush1.msra.mxu0 0.0
          %936 = vmatprep.subr.mxu0 0.0
          %937 = vmatpush1.msra.mxu0 0.0
          %938 = vmatprep.subr.mxu0 0.0
          %939 = vmatpush1.msra.mxu0 0.0
          %940 = vmatprep.subr.mxu0 0.0
          %941 = vmatpush1.msra.mxu0 0.0
          %942 = vmatprep.subr.mxu0 0.0
          %943 = vmatpush1.msra.mxu0 0.0
          %944 = vmatprep.subr.mxu0 0.0
          %945 = vmatpush1.msra.mxu0 0.0
          %946 = vmatprep.subr.mxu0 0.0
          %947 = vmatpush1.msra.mxu0 0.0
          %948 = vmatprep.subr.mxu0 0.0
          %949 = vmatpush1.msra.mxu0 0.0
          %950 = vmatprep.subr.mxu0 0.0
          %951 = vmatpush1.msra.mxu0 0.0
          %952 = vmatprep.subr.mxu0 0.0
          %953 = vmatpush1.msra.mxu0 0.0
          %954 = vmatprep.subr.mxu0 0.0
          %955 = vmatpush1.msra.mxu0 0.0
          %956 = vmatprep.subr.mxu0 0.0
          %957 = vmatpush1.msra.mxu0 0.0
          %958 = vmatprep.subr.mxu0 0.0
          %959 = vmatpush1.msra.mxu0 0.0
          %960 = vmatprep.subr.mxu0 0.0
          %961 = vmatpush1.msra.mxu0 0.0
          %962 = vmatprep.subr.mxu0 0.0
          %963 = vmatpush1.msra.mxu0 0.0
          %964 = vmatprep.subr.mxu0 0.0
          %965 = vmatpush1.msra.mxu0 0.0
          %966 = vmatprep.subr.mxu0 0.0
          %967 = vmatpush1.msra.mxu0 0.0
          %968 = vmatprep.subr.mxu0 0.0
          %969 = vmatpush1.msra.mxu0 0.0
          %970 = vmatprep.mubr.f32.mxu0 0.0
          %971 = vmatmul.mubr.f32.gmra.mrb[0].mxu0 %v901
          %v972 = vpop.f32.mrb[0].mxu0
          %v973 = vadd.f32 0.0, %v972
          %v974 = vpop.f32.mrb[0].mxu0
          %975 = vmatprep.mubr.f32.mxu0 0.0
          %976 = vmatmul.mubr.f32.gmra.mrb[0].mxu0 %v904
          %v977 = vpop.f32.mrb[0].mxu0
          %v978 = vadd.f32 0.0, %v977
          %v979 = vpop.f32.mrb[0].mxu0
          %980 = vdwg.mxu0
          %981 = vst.msk [vmem:[#allocation2] sm:$0xff] %vm899, %v973
          %982 = vst.msk [vmem:[#allocation2 + $0x8] sm:$0xff] %vm899, %v978
          %v983 = vld [vmem:[#allocation13] sm:$0x3]
          %v984 = vld [vmem:[#allocation13 + $0x2] sm:$0x3]
          %vm985 = vcmask 254976
          %986 = vst.msk [vmem:[#allocation3] sm:$0x3] %vm985, %v983
          %987 = vst.msk [vmem:[#allocation3 + $0x2] sm:$0x3] %vm985, %v984
        $region152: #{tpu_custom_call.1} parent=91 // pred_fallthru
          _
        %v988 = vld [vmem:[%s766] sm:$0x3]
        %s989 = scalar_lea.vmem [#allocation3], 2
        %v990 = vld [vmem:[%s989] sm:$0x3]
        %v991 = vld [vmem:[#allocation9] sm:$0xff]
        %v992 = vld [vmem:[#allocation9 + $0x8] sm:$0xff]
        %v993 = vld [vmem:[#allocation9 + $0x10] sm:$0xff]
        %v994 = vld [vmem:[#allocation9 + $0x18] sm:$0xff]
        %vm995 = vcmask 261120
        %v997 = vsel %vm995, %v990, 0
        %999 = vmatprep.subr.mxu0 0.0
        %1000 = vmatpush1.msra.mxu0 %v991
        %1001 = vmatprep.subr.mxu0 0.0
        %1002 = vmatpush1.msra.mxu0 %v992
        %1003 = vmatprep.subr.mxu0 0.0
        %1004 = vmatpush1.msra.mxu0 %v993
        %1005 = vmatprep.subr.mxu0 0.0
        %1006 = vmatpush1.msra.mxu0 %v994
        %1007 = vmatprep.subr.mxu0 0.0
        %1008 = vmatpush1.msra.mxu0 0.0
        %1009 = vmatprep.subr.mxu0 0.0
        %1010 = vmatpush1.msra.mxu0 0.0
        %1011 = vmatprep.subr.mxu0 0.0
        %1012 = vmatpush1.msra.mxu0 0.0
        %1013 = vmatprep.subr.mxu0 0.0
        %1014 = vmatpush1.msra.mxu0 0.0
        %1015 = vmatprep.subr.mxu0 0.0
        %1016 = vmatpush1.msra.mxu0 0.0
        %1017 = vmatprep.subr.mxu0 0.0
        %1018 = vmatpush1.msra.mxu0 0.0
        %1019 = vmatprep.subr.mxu0 0.0
        %1020 = vmatpush1.msra.mxu0 0.0
        %1021 = vmatprep.subr.mxu0 0.0
        %1022 = vmatpush1.msra.mxu0 0.0
        %1023 = vmatprep.subr.mxu0 0.0
        %1024 = vmatpush1.msra.mxu0 0.0
        %1025 = vmatprep.subr.mxu0 0.0
        %1026 = vmatpush1.msra.mxu0 0.0
        %1027 = vmatprep.subr.mxu0 0.0
        %1028 = vmatpush1.msra.mxu0 0.0
        %1029 = vmatprep.subr.mxu0 0.0
        %1030 = vmatpush1.msra.mxu0 0.0
        %1031 = vmatprep.subr.mxu0 0.0
        %1032 = vmatpush1.msra.mxu0 0.0
        %1033 = vmatprep.subr.mxu0 0.0
        %1034 = vmatpush1.msra.mxu0 0.0
        %1035 = vmatprep.subr.mxu0 0.0
        %1036 = vmatpush1.msra.mxu0 0.0
        %1037 = vmatprep.subr.mxu0 0.0
        %1038 = vmatpush1.msra.mxu0 0.0
        %1039 = vmatprep.subr.mxu0 0.0
        %1040 = vmatpush1.msra.mxu0 0.0
        %1041 = vmatprep.subr.mxu0 0.0
        %1042 = vmatpush1.msra.mxu0 0.0
        %1043 = vmatprep.subr.mxu0 0.0
        %1044 = vmatpush1.msra.mxu0 0.0
        %1045 = vmatprep.subr.mxu0 0.0
        %1046 = vmatpush1.msra.mxu0 0.0
        %1047 = vmatprep.subr.mxu0 0.0
        %1048 = vmatpush1.msra.mxu0 0.0
        %1049 = vmatprep.subr.mxu0 0.0
        %1050 = vmatpush1.msra.mxu0 0.0
        %1051 = vmatprep.subr.mxu0 0.0
        %1052 = vmatpush1.msra.mxu0 0.0
        %1053 = vmatprep.subr.mxu0 0.0
        %1054 = vmatpush1.msra.mxu0 0.0
        %1055 = vmatprep.subr.mxu0 0.0
        %1056 = vmatpush1.msra.mxu0 0.0
        %1057 = vmatprep.subr.mxu0 0.0
        %1058 = vmatpush1.msra.mxu0 0.0
        %1059 = vmatprep.subr.mxu0 0.0
        %1060 = vmatpush1.msra.mxu0 0.0
        %1061 = vmatprep.subr.mxu0 0.0
        %1062 = vmatpush1.msra.mxu0 0.0
        %1063 = vmatprep.mubr.f32.mxu0 0.0
        %1064 = vmatmul.mubr.f32.gmra.mrb[0].mxu0 %v997
        %v1065 = vpop.f32.mrb[0].mxu0
        %v1066 = vadd.f32 0.0, %v1065
        %v1067 = vpop.f32.mrb[0].mxu0
        %1068 = vdwg.mxu0
        %v1069 = vld [vmem:[#allocation2] sm:$0xff]
        %v1070 = vld [vmem:[#allocation2 + $0x8] sm:$0xff]
        %v1073 = vunpack.c.l.s4 1966171168
        %v1074 = vunpack.c.0.s8 %v1073
        %v1075 = vlaneseq
        %v1076 = vshrl.u32 %v1075, 7
        %v1077 = vsub.s32 %v1074, %v1076
        %v1078 = vrot.slane %v1066, %v1077
        %v1079 = vcombine.high %v1078, %v1078
        %v1081 = vunpack.c.l.s4 1966171168
        %v1082 = vunpack.c.0.s8 %v1081
        %v1083 = vlaneseq
        %v1084 = vshrl.u32 %v1083, 7
        %v1085 = vsub.s32 %v1082, %v1084
        %v1086 = vrot.slane %v1078, %v1085
        %v1088 = vunpack.c.l.s4 1966171168
        %v1089 = vunpack.c.0.s8 %v1088
        %v1090 = vlaneseq
        %v1091 = vshrl.u32 %v1090, 7
        %v1092 = vsub.s32 %v1089, %v1091
        %v1093 = vrot.slane %v1079, %v1092
        %v1094 = vlaneseq
        %v1095 = vshrl.u32 %v1094, 7
        %v1096 = vsub.s32 0, %v1095
        %v1097 = vrot.slane %v1086, %v1096
        %v1098 = vlaneseq
        %v1099 = vshrl.u32 %v1098, 7
        %v1100 = vsub.s32 0, %v1099
        %v1101 = vrot.slane %v1093, %v1100
        %v1104 = vadd.f32 %v1069, %v1097
        %v1105 = vadd.f32 %v1070, %v1101
        %v1106 = vtanh.pop %v1104
        %v1107 = vtanh.pop %v1105
        %v1108 = vld [vmem:[#allocation12] sm:$0x1]
        %v1110 = vlaneseq
        %v1111 = vshrl.u32 %v1110, 7
        %v1112 = vsub.s32 0, %v1111
        %v1113 = vrot.slane %v1108, %v1112
        %v1115 = vmul.f32 %v1106, %v1113
        %v1116 = vmul.f32 %v1107, %v1113
        %v1117 = vsel %vm995, %v1115, 0.0
        %1118 = vadd.xlane.f32.xlu0 %v1117
        %v1119 = vpop.xlane.xlu0 %1118
        %v1120 = vsel %vm995, %v1116, 0.0
        %1121 = vadd.xlane.f32.xlu0 %v1120
        %v1122 = vpop.xlane.xlu0 %1121
        %v1123 = vlaneseq
        %v1124 = vand.u32 %v1123, 127
        %v1125 = vld [vmem:[%s888] sm:$0x3]
        %1126 = vset.pattern.permute.xlu0 0
        %1127 = vperm.xlu0 %1126, %v1125
        %v1128 = vpop.permute.xlu0 %1127
        %vm1129 = vcmp.lt.s32.totalorder %v1124, %v1128
        %v1132 = vlaneseq
        %v1133 = vshrl.u32 %v1132, 7
        %v1134 = vsub.s32 %v1124, %v1133
        %v1135 = vrot.slane %v1119, %v1134
        %v1136 = vlaneseq
        %v1137 = vshrl.u32 %v1136, 7
        %v1138 = vsub.s32 %v1124, %v1137
        %v1139 = vrot.slane %v1122, %v1138
        %vm1140 = vcmask 1041409
        %v1141 = vsel %vm1140, %v1139, %v1135
        %v1143 = vsel %vm1129, %v1141, -1000000.0
        %vm1144 = vcmask 58368
        %v1145 = vsel %vm1144, %v1143, -inf
        %1146 = vmax.xlane.f32.xlu0 %v1145
        %v1147 = vpop.xlane.xlu0 %1146
        %v1148 = vsub.f32 %v1143, %v1147
        %v1149 = vmul.f32 %v1148, 1.442695
        %v1150 = vpow.pop %v1149
        %v1151 = vsel %vm1144, %v1150, 0.0
        %1152 = vadd.xlane.f32.xlu0 %v1151
        %v1153 = vpop.xlane.xlu0 %1152
        %v1154 = vrcp.pop %v1153
        %v1155 = vmul.f32 %v1150, %v1154
        %1156 = vst.msk [vmem:[%s881] sm:$0x3] %vm1144, %v1155
        %v1157 = vlaneseq
        %v1158 = vshrl.u32 %v1157, 7
        %v1159 = vsub.s32 0, %v1158
        %v1160 = vrot.slane %v1155, %v1159
        %1162 = vbcast.lane.b32.xlu0 %v1160, 256
        %v1163 = vpop.permute.xlu0 %1162
        %v1164 = vlaneseq
        %v1165 = vshrl.u32 %v1164, 7
        %v1166 = vsub.s32 1, %v1165
        %v1167 = vrot.slane %v1155, %v1166
        %1169 = vbcast.lane.b32.xlu0 %v1167, 256
        %v1170 = vpop.permute.xlu0 %1169
        %v1171 = vld [vmem:[#allocation7] sm:$0xff]
        %v1172 = vld [vmem:[#allocation7 + $0x8] sm:$0xff]
        %v1173 = vmul.f32 %v1163, %v1171
        %v1174 = vmul.f32 %v1170, %v1172
        %v1175 = vsel %vm995, %v1173, 0.0
        %v1176 = vrot.slane %v1175, 4
        %v1177 = vadd.f32 %v1175, %v1176
        %v1178 = vrot.slane %v1177, 2
        %v1179 = vadd.f32 %v1177, %v1178
        %v1180 = vrot.slane %v1179, 1
        %v1181 = vadd.f32 %v1179, %v1180
        %v1182 = vsel %vm995, %v1174, 0.0
        %v1183 = vrot.slane %v1182, 4
        %v1184 = vadd.f32 %v1182, %v1183
        %v1185 = vrot.slane %v1184, 2
        %v1186 = vadd.f32 %v1184, %v1185
        %v1187 = vrot.slane %v1186, 1
        %v1188 = vadd.f32 %v1186, %v1187
        %v1189 = vld [vmem:[#allocation3] sm:$0x3]
        %v1190 = vld [vmem:[#allocation15] sm:$0xff]
        %v1191 = vld [vmem:[#allocation15 + $0x8] sm:$0xff]
        %v1192 = vld [vmem:[#allocation15 + $0x10] sm:$0xff]
        %v1193 = vld [vmem:[#allocation15 + $0x18] sm:$0xff]
        %v1194 = vld [vmem:[#allocation16] sm:$0xff]
        %v1195 = vld [vmem:[#allocation16 + $0x8] sm:$0xff]
        %vm1196 = vcmask 130048
        %v1198 = vsel %vm1196, %v988, 0
        %1200 = vmatprep.subr.mxu0 0.0
        %1201 = vmatpush1.msra.mxu0 %v1194
        %1202 = vmatprep.subr.mxu0 0.0
        %1203 = vmatpush1.msra.mxu0 %v1195
        %1204 = vmatprep.subr.mxu0 0.0
        %1205 = vmatpush1.msra.mxu0 0.0
        %1206 = vmatprep.subr.mxu0 0.0
        %1207 = vmatpush1.msra.mxu0 0.0
        %1208 = vmatprep.subr.mxu0 0.0
        %1209 = vmatpush1.msra.mxu0 0.0
        %1210 = vmatprep.subr.mxu0 0.0
        %1211 = vmatpush1.msra.mxu0 0.0
        %1212 = vmatprep.subr.mxu0 0.0
        %1213 = vmatpush1.msra.mxu0 0.0
        %1214 = vmatprep.subr.mxu0 0.0
        %1215 = vmatpush1.msra.mxu0 0.0
        %1216 = vmatprep.subr.mxu0 0.0
        %1217 = vmatpush1.msra.mxu0 0.0
        %1218 = vmatprep.subr.mxu0 0.0
        %1219 = vmatpush1.msra.mxu0 0.0
        %1220 = vmatprep.subr.mxu0 0.0
        %1221 = vmatpush1.msra.mxu0 0.0
        %1222 = vmatprep.subr.mxu0 0.0
        %1223 = vmatpush1.msra.mxu0 0.0
        %1224 = vmatprep.subr.mxu0 0.0
        %1225 = vmatpush1.msra.mxu0 0.0
        %1226 = vmatprep.subr.mxu0 0.0
        %1227 = vmatpush1.msra.mxu0 0.0
        %1228 = vmatprep.subr.mxu0 0.0
        %1229 = vmatpush1.msra.mxu0 0.0
        %1230 = vmatprep.subr.mxu0 0.0
        %1231 = vmatpush1.msra.mxu0 0.0
        %1232 = vmatprep.subr.mxu0 0.0
        %1233 = vmatpush1.msra.mxu0 0.0
        %1234 = vmatprep.subr.mxu0 0.0
        %1235 = vmatpush1.msra.mxu0 0.0
        %1236 = vmatprep.subr.mxu0 0.0
        %1237 = vmatpush1.msra.mxu0 0.0
        %1238 = vmatprep.subr.mxu0 0.0
        %1239 = vmatpush1.msra.mxu0 0.0
        %1240 = vmatprep.subr.mxu0 0.0
        %1241 = vmatpush1.msra.mxu0 0.0
        %1242 = vmatprep.subr.mxu0 0.0
        %1243 = vmatpush1.msra.mxu0 0.0
        %1244 = vmatprep.subr.mxu0 0.0
        %1245 = vmatpush1.msra.mxu0 0.0
        %1246 = vmatprep.subr.mxu0 0.0
        %1247 = vmatpush1.msra.mxu0 0.0
        %1248 = vmatprep.subr.mxu0 0.0
        %1249 = vmatpush1.msra.mxu0 0.0
        %1250 = vmatprep.subr.mxu0 0.0
        %1251 = vmatpush1.msra.mxu0 0.0
        %1252 = vmatprep.subr.mxu0 0.0
        %1253 = vmatpush1.msra.mxu0 0.0
        %1254 = vmatprep.subr.mxu0 0.0
        %1255 = vmatpush1.msra.mxu0 0.0
        %1256 = vmatprep.subr.mxu0 0.0
        %1257 = vmatpush1.msra.mxu0 0.0
        %1258 = vmatprep.subr.mxu0 0.0
        %1259 = vmatpush1.msra.mxu0 0.0
        %1260 = vmatprep.subr.mxu0 0.0
        %1261 = vmatpush1.msra.mxu0 0.0
        %1262 = vmatprep.subr.mxu0 0.0
        %1263 = vmatpush1.msra.mxu0 0.0
        %1264 = vmatprep.mubr.f32.mxu0 0.0
        %1265 = vmatmul.mubr.f32.gmra.mrb[0].mxu0 %v1198
        %v1266 = vpop.f32.mrb[0].mxu0
        %v1267 = vadd.f32 0.0, %v1266
        %v1268 = vpop.f32.mrb[0].mxu0
        %1269 = vdwg.mxu0
        %v1272 = vsel %vm1140, %v1188, %v1181
        %v1273 = vsel %vm995, %v1272, 0
        %1275 = vmatprep.subr.mxu0 0.0
        %1276 = vmatpush1.msra.mxu0 %v1190
        %1277 = vmatprep.subr.mxu0 0.0
        %1278 = vmatpush1.msra.mxu0 %v1191
        %1279 = vmatprep.subr.mxu0 0.0
        %1280 = vmatpush1.msra.mxu0 %v1192
        %1281 = vmatprep.subr.mxu0 0.0
        %1282 = vmatpush1.msra.mxu0 %v1193
        %1283 = vmatprep.subr.mxu0 0.0
        %1284 = vmatpush1.msra.mxu0 0.0
        %1285 = vmatprep.subr.mxu0 0.0
        %1286 = vmatpush1.msra.mxu0 0.0
        %1287 = vmatprep.subr.mxu0 0.0
        %1288 = vmatpush1.msra.mxu0 0.0
        %1289 = vmatprep.subr.mxu0 0.0
        %1290 = vmatpush1.msra.mxu0 0.0
        %1291 = vmatprep.subr.mxu0 0.0
        %1292 = vmatpush1.msra.mxu0 0.0
        %1293 = vmatprep.subr.mxu0 0.0
        %1294 = vmatpush1.msra.mxu0 0.0
        %1295 = vmatprep.subr.mxu0 0.0
        %1296 = vmatpush1.msra.mxu0 0.0
        %1297 = vmatprep.subr.mxu0 0.0
        %1298 = vmatpush1.msra.mxu0 0.0
        %1299 = vmatprep.subr.mxu0 0.0
        %1300 = vmatpush1.msra.mxu0 0.0
        %1301 = vmatprep.subr.mxu0 0.0
        %1302 = vmatpush1.msra.mxu0 0.0
        %1303 = vmatprep.subr.mxu0 0.0
        %1304 = vmatpush1.msra.mxu0 0.0
        %1305 = vmatprep.subr.mxu0 0.0
        %1306 = vmatpush1.msra.mxu0 0.0
        %1307 = vmatprep.subr.mxu0 0.0
        %1308 = vmatpush1.msra.mxu0 0.0
        %1309 = vmatprep.subr.mxu0 0.0
        %1310 = vmatpush1.msra.mxu0 0.0
        %1311 = vmatprep.subr.mxu0 0.0
        %1312 = vmatpush1.msra.mxu0 0.0
        %1313 = vmatprep.subr.mxu0 0.0
        %1314 = vmatpush1.msra.mxu0 0.0
        %1315 = vmatprep.subr.mxu0 0.0
        %1316 = vmatpush1.msra.mxu0 0.0
        %1317 = vmatprep.subr.mxu0 0.0
        %1318 = vmatpush1.msra.mxu0 0.0
        %1319 = vmatprep.subr.mxu0 0.0
        %1320 = vmatpush1.msra.mxu0 0.0
        %1321 = vmatprep.subr.mxu0 0.0
        %1322 = vmatpush1.msra.mxu0 0.0
        %1323 = vmatprep.subr.mxu0 0.0
        %1324 = vmatpush1.msra.mxu0 0.0
        %1325 = vmatprep.subr.mxu0 0.0
        %1326 = vmatpush1.msra.mxu0 0.0
        %1327 = vmatprep.subr.mxu0 0.0
        %1328 = vmatpush1.msra.mxu0 0.0
        %1329 = vmatprep.subr.mxu0 0.0
        %1330 = vmatpush1.msra.mxu0 0.0
        %1331 = vmatprep.subr.mxu0 0.0
        %1332 = vmatpush1.msra.mxu0 0.0
        %1333 = vmatprep.subr.mxu0 0.0
        %1334 = vmatpush1.msra.mxu0 0.0
        %1335 = vmatprep.subr.mxu0 0.0
        %1336 = vmatpush1.msra.mxu0 0.0
        %1337 = vmatprep.subr.mxu0 0.0
        %1338 = vmatpush1.msra.mxu0 0.0
        %1339 = vmatprep.mubr.f32.mxu0 0.0
        %1340 = vmatmul.mubr.f32.gmra.mrb[0].mxu0 %v1273
        %v1341 = vpop.f32.mrb[0].mxu0
        %v1342 = vadd.f32 %v1267, %v1341
        %v1343 = vpop.f32.mrb[0].mxu0
        %1344 = vdwg.mxu0
        %v1345 = vld [vmem:[#allocation18] sm:$0x1]
        %v1347 = vlaneseq
        %v1348 = vshrl.u32 %v1347, 7
        %v1349 = vsub.s32 0, %v1348
        %v1350 = vrot.slane %v1345, %v1349
        %v1352 = vadd.f32 %v1342, %v1350
        %v1353 = vld [vmem:[%s9] sm:$0xff]
        %v1354 = vld [vmem:[%s9 + $0x8] sm:$0xff]
        %v1355 = vld [vmem:[%s9 + $0x10] sm:$0xff]
        %v1356 = vld [vmem:[%s9 + $0x18] sm:$0xff]
        %v1357 = vld [vmem:[#allocation19] sm:$0x1]
        %v1359 = vlaneseq
        %v1360 = vshrl.u32 %v1359, 7
        %v1361 = vsub.s32 0, %v1360
        %v1362 = vrot.slane %v1357, %v1361
        %v1365 = vsel %vm995, %v1189, 0
        %1367 = vmatprep.subr.mxu0 0.0
        %1368 = vmatpush1.msra.mxu0 %v1353
        %1369 = vmatprep.subr.mxu0 0.0
        %1370 = vmatpush1.msra.mxu0 %v1354
        %1371 = vmatprep.subr.mxu0 0.0
        %1372 = vmatpush1.msra.mxu0 %v1355
        %1373 = vmatprep.subr.mxu0 0.0
        %1374 = vmatpush1.msra.mxu0 %v1356
        %1375 = vmatprep.subr.mxu0 0.0
        %1376 = vmatpush1.msra.mxu0 0.0
        %1377 = vmatprep.subr.mxu0 0.0
        %1378 = vmatpush1.msra.mxu0 0.0
        %1379 = vmatprep.subr.mxu0 0.0
        %1380 = vmatpush1.msra.mxu0 0.0
        %1381 = vmatprep.subr.mxu0 0.0
        %1382 = vmatpush1.msra.mxu0 0.0
        %1383 = vmatprep.subr.mxu0 0.0
        %1384 = vmatpush1.msra.mxu0 0.0
        %1385 = vmatprep.subr.mxu0 0.0
        %1386 = vmatpush1.msra.mxu0 0.0
        %1387 = vmatprep.subr.mxu0 0.0
        %1388 = vmatpush1.msra.mxu0 0.0
        %1389 = vmatprep.subr.mxu0 0.0
        %1390 = vmatpush1.msra.mxu0 0.0
        %1391 = vmatprep.subr.mxu0 0.0
        %1392 = vmatpush1.msra.mxu0 0.0
        %1393 = vmatprep.subr.mxu0 0.0
        %1394 = vmatpush1.msra.mxu0 0.0
        %1395 = vmatprep.subr.mxu0 0.0
        %1396 = vmatpush1.msra.mxu0 0.0
        %1397 = vmatprep.subr.mxu0 0.0
        %1398 = vmatpush1.msra.mxu0 0.0
        %1399 = vmatprep.subr.mxu0 0.0
        %1400 = vmatpush1.msra.mxu0 0.0
        %1401 = vmatprep.subr.mxu0 0.0
        %1402 = vmatpush1.msra.mxu0 0.0
        %1403 = vmatprep.subr.mxu0 0.0
        %1404 = vmatpush1.msra.mxu0 0.0
        %1405 = vmatprep.subr.mxu0 0.0
        %1406 = vmatpush1.msra.mxu0 0.0
        %1407 = vmatprep.subr.mxu0 0.0
        %1408 = vmatpush1.msra.mxu0 0.0
        %1409 = vmatprep.subr.mxu0 0.0
        %1410 = vmatpush1.msra.mxu0 0.0
        %1411 = vmatprep.subr.mxu0 0.0
        %1412 = vmatpush1.msra.mxu0 0.0
        %1413 = vmatprep.subr.mxu0 0.0
        %1414 = vmatpush1.msra.mxu0 0.0
        %1415 = vmatprep.subr.mxu0 0.0
        %1416 = vmatpush1.msra.mxu0 0.0
        %1417 = vmatprep.subr.mxu0 0.0
        %1418 = vmatpush1.msra.mxu0 0.0
        %1419 = vmatprep.subr.mxu0 0.0
        %1420 = vmatpush1.msra.mxu0 0.0
        %1421 = vmatprep.subr.mxu0 0.0
        %1422 = vmatpush1.msra.mxu0 0.0
        %1423 = vmatprep.subr.mxu0 0.0
        %1424 = vmatpush1.msra.mxu0 0.0
        %1425 = vmatprep.subr.mxu0 0.0
        %1426 = vmatpush1.msra.mxu0 0.0
        %1427 = vmatprep.subr.mxu0 0.0
        %1428 = vmatpush1.msra.mxu0 0.0
        %1429 = vmatprep.subr.mxu0 0.0
        %1430 = vmatpush1.msra.mxu0 0.0
        %1431 = vmatprep.mubr.f32.mxu0 0.0
        %1432 = vmatmul.mubr.f32.gmra.mrb[0].mxu0 %v1365
        %v1433 = vpop.f32.mrb[0].mxu0
        %v1434 = vadd.f32 %v1362, %v1433
        %v1435 = vpop.f32.mrb[0].mxu0
        %1436 = vdwg.mxu0
        %v1437 = vadd.f32 %v1352, %v1434
        %v1438 = vsub.f32 0.0, %v1437
        %v1439 = vmul.f32 %v1438, 1.442695
        %v1440 = vpow.pop %v1439
        %v1441 = vadd.f32 %v1440, 1.0
        %v1442 = vrcp.pop %v1441
        %v1443 = vmul.f32 1.0, %v1442
        %1445 = vrot.lane.b32.xlu0 %v1434, 64
        %v1446 = vpop.permute.xlu0 %1445
        %v1448 = vmul.f32 %v1443, %v1446
        %1450 = vrot.lane.b32.xlu0 %v1448, 64
        %v1451 = vpop.permute.xlu0 %1450
        %v1453 = vadd.f32 %v1352, %v1451
        %v1454 = vtanh.pop %v1453
        %v1455 = vsub.f32 1.0, %v1443
        %1457 = vrot.lane.b32.xlu0 %v1454, 96
        %v1458 = vpop.permute.xlu0 %1457
        %v1460 = vmul.f32 %v1455, %v1458
        %1461 = vrot.lane.b32.xlu0 %v1189, 32
        %v1462 = vpop.permute.xlu0 %1461
        %v1464 = vmul.f32 %v1443, %v1462
        %v1465 = vadd.f32 %v1460, %v1464
        %1467 = vrot.lane.b32.xlu0 %v1465, 96
        %v1468 = vpop.permute.xlu0 %1467
        %vm1470 = vcmask 254976
        %1471 = vst.msk [vmem:[#allocation3] sm:$0x3] %vm1470, %v1468
        %v1472 = vld [vmem:[%s989] sm:$0x3]
        %v1473 = vld [vmem:[#allocation21] sm:$0xff]
        %v1474 = vld [vmem:[#allocation21 + $0x8] sm:$0xff]
        %v1475 = vld [vmem:[#allocation21 + $0x10] sm:$0xff]
        %v1476 = vld [vmem:[#allocation21 + $0x18] sm:$0xff]
        %v1477 = vld [vmem:[#allocation24] sm:$0x1]
        %v1479 = vlaneseq
        %v1480 = vshrl.u32 %v1479, 7
        %v1481 = vsub.s32 0, %v1480
        %v1482 = vrot.slane %v1477, %v1481
        %v1484 = vsel %vm995, %v1468, 0
        %1486 = vmatprep.subr.mxu0 0.0
        %1487 = vmatpush1.msra.mxu0 %v1473
        %1488 = vmatprep.subr.mxu0 0.0
        %1489 = vmatpush1.msra.mxu0 %v1474
        %1490 = vmatprep.subr.mxu0 0.0
        %1491 = vmatpush1.msra.mxu0 %v1475
        %1492 = vmatprep.subr.mxu0 0.0
        %1493 = vmatpush1.msra.mxu0 %v1476
        %1494 = vmatprep.subr.mxu0 0.0
        %1495 = vmatpush1.msra.mxu0 0.0
        %1496 = vmatprep.subr.mxu0 0.0
        %1497 = vmatpush1.msra.mxu0 0.0
        %1498 = vmatprep.subr.mxu0 0.0
        %1499 = vmatpush1.msra.mxu0 0.0
        %1500 = vmatprep.subr.mxu0 0.0
        %1501 = vmatpush1.msra.mxu0 0.0
        %1502 = vmatprep.subr.mxu0 0.0
        %1503 = vmatpush1.msra.mxu0 0.0
        %1504 = vmatprep.subr.mxu0 0.0
        %1505 = vmatpush1.msra.mxu0 0.0
        %1506 = vmatprep.subr.mxu0 0.0
        %1507 = vmatpush1.msra.mxu0 0.0
        %1508 = vmatprep.subr.mxu0 0.0
        %1509 = vmatpush1.msra.mxu0 0.0
        %1510 = vmatprep.subr.mxu0 0.0
        %1511 = vmatpush1.msra.mxu0 0.0
        %1512 = vmatprep.subr.mxu0 0.0
        %1513 = vmatpush1.msra.mxu0 0.0
        %1514 = vmatprep.subr.mxu0 0.0
        %1515 = vmatpush1.msra.mxu0 0.0
        %1516 = vmatprep.subr.mxu0 0.0
        %1517 = vmatpush1.msra.mxu0 0.0
        %1518 = vmatprep.subr.mxu0 0.0
        %1519 = vmatpush1.msra.mxu0 0.0
        %1520 = vmatprep.subr.mxu0 0.0
        %1521 = vmatpush1.msra.mxu0 0.0
        %1522 = vmatprep.subr.mxu0 0.0
        %1523 = vmatpush1.msra.mxu0 0.0
        %1524 = vmatprep.subr.mxu0 0.0
        %1525 = vmatpush1.msra.mxu0 0.0
        %1526 = vmatprep.subr.mxu0 0.0
        %1527 = vmatpush1.msra.mxu0 0.0
        %1528 = vmatprep.subr.mxu0 0.0
        %1529 = vmatpush1.msra.mxu0 0.0
        %1530 = vmatprep.subr.mxu0 0.0
        %1531 = vmatpush1.msra.mxu0 0.0
        %1532 = vmatprep.subr.mxu0 0.0
        %1533 = vmatpush1.msra.mxu0 0.0
        %1534 = vmatprep.subr.mxu0 0.0
        %1535 = vmatpush1.msra.mxu0 0.0
        %1536 = vmatprep.subr.mxu0 0.0
        %1537 = vmatpush1.msra.mxu0 0.0
        %1538 = vmatprep.subr.mxu0 0.0
        %1539 = vmatpush1.msra.mxu0 0.0
        %1540 = vmatprep.subr.mxu0 0.0
        %1541 = vmatpush1.msra.mxu0 0.0
        %1542 = vmatprep.subr.mxu0 0.0
        %1543 = vmatpush1.msra.mxu0 0.0
        %1544 = vmatprep.subr.mxu0 0.0
        %1545 = vmatpush1.msra.mxu0 0.0
        %1546 = vmatprep.subr.mxu0 0.0
        %1547 = vmatpush1.msra.mxu0 0.0
        %1548 = vmatprep.subr.mxu0 0.0
        %1549 = vmatpush1.msra.mxu0 0.0
        %1550 = vmatprep.mubr.f32.mxu0 0.0
        %1551 = vmatmul.mubr.f32.gmra.mrb[0].mxu0 %v1484
        %v1552 = vpop.f32.mrb[0].mxu0
        %v1553 = vadd.f32 %v1482, %v1552
        %v1554 = vpop.f32.mrb[0].mxu0
        %1555 = vdwg.mxu0
        %v1556 = vld [vmem:[#allocation22] sm:$0xff]
        %v1557 = vld [vmem:[#allocation22 + $0x8] sm:$0xff]
        %v1558 = vld [vmem:[#allocation22 + $0x10] sm:$0xff]
        %v1559 = vld [vmem:[#allocation22 + $0x18] sm:$0xff]
        %v1560 = vld [vmem:[#allocation25] sm:$0x1]
        %v1562 = vlaneseq
        %v1563 = vshrl.u32 %v1562, 7
        %v1564 = vsub.s32 0, %v1563
        %v1565 = vrot.slane %v1560, %v1564
        %v1568 = vsel %vm995, %v1472, 0
        %1570 = vmatprep.subr.mxu0 0.0
        %1571 = vmatpush1.msra.mxu0 %v1556
        %1572 = vmatprep.subr.mxu0 0.0
        %1573 = vmatpush1.msra.mxu0 %v1557
        %1574 = vmatprep.subr.mxu0 0.0
        %1575 = vmatpush1.msra.mxu0 %v1558
        %1576 = vmatprep.subr.mxu0 0.0
        %1577 = vmatpush1.msra.mxu0 %v1559
        %1578 = vmatprep.subr.mxu0 0.0
        %1579 = vmatpush1.msra.mxu0 0.0
        %1580 = vmatprep.subr.mxu0 0.0
        %1581 = vmatpush1.msra.mxu0 0.0
        %1582 = vmatprep.subr.mxu0 0.0
        %1583 = vmatpush1.msra.mxu0 0.0
        %1584 = vmatprep.subr.mxu0 0.0
        %1585 = vmatpush1.msra.mxu0 0.0
        %1586 = vmatprep.subr.mxu0 0.0
        %1587 = vmatpush1.msra.mxu0 0.0
        %1588 = vmatprep.subr.mxu0 0.0
        %1589 = vmatpush1.msra.mxu0 0.0
        %1590 = vmatprep.subr.mxu0 0.0
        %1591 = vmatpush1.msra.mxu0 0.0
        %1592 = vmatprep.subr.mxu0 0.0
        %1593 = vmatpush1.msra.mxu0 0.0
        %1594 = vmatprep.subr.mxu0 0.0
        %1595 = vmatpush1.msra.mxu0 0.0
        %1596 = vmatprep.subr.mxu0 0.0
        %1597 = vmatpush1.msra.mxu0 0.0
        %1598 = vmatprep.subr.mxu0 0.0
        %1599 = vmatpush1.msra.mxu0 0.0
        %1600 = vmatprep.subr.mxu0 0.0
        %1601 = vmatpush1.msra.mxu0 0.0
        %1602 = vmatprep.subr.mxu0 0.0
        %1603 = vmatpush1.msra.mxu0 0.0
        %1604 = vmatprep.subr.mxu0 0.0
        %1605 = vmatpush1.msra.mxu0 0.0
        %1606 = vmatprep.subr.mxu0 0.0
        %1607 = vmatpush1.msra.mxu0 0.0
        %1608 = vmatprep.subr.mxu0 0.0
        %1609 = vmatpush1.msra.mxu0 0.0
        %1610 = vmatprep.subr.mxu0 0.0
        %1611 = vmatpush1.msra.mxu0 0.0
        %1612 = vmatprep.subr.mxu0 0.0
        %1613 = vmatpush1.msra.mxu0 0.0
        %1614 = vmatprep.subr.mxu0 0.0
        %1615 = vmatpush1.msra.mxu0 0.0
        %1616 = vmatprep.subr.mxu0 0.0
        %1617 = vmatpush1.msra.mxu0 0.0
        %1618 = vmatprep.subr.mxu0 0.0
        %1619 = vmatpush1.msra.mxu0 0.0
        %1620 = vmatprep.subr.mxu0 0.0
        %1621 = vmatpush1.msra.mxu0 0.0
        %1622 = vmatprep.subr.mxu0 0.0
        %1623 = vmatpush1.msra.mxu0 0.0
        %1624 = vmatprep.subr.mxu0 0.0
        %1625 = vmatpush1.msra.mxu0 0.0
        %1626 = vmatprep.subr.mxu0 0.0
        %1627 = vmatpush1.msra.mxu0 0.0
        %1628 = vmatprep.subr.mxu0 0.0
        %1629 = vmatpush1.msra.mxu0 0.0
        %1630 = vmatprep.subr.mxu0 0.0
        %1631 = vmatpush1.msra.mxu0 0.0
        %1632 = vmatprep.subr.mxu0 0.0
        %1633 = vmatpush1.msra.mxu0 0.0
        %1634 = vmatprep.mubr.f32.mxu0 0.0
        %1635 = vmatmul.mubr.f32.gmra.mrb[0].mxu0 %v1568
        %v1636 = vpop.f32.mrb[0].mxu0
        %v1637 = vadd.f32 %v1565, %v1636
        %v1638 = vpop.f32.mrb[0].mxu0
        %1639 = vdwg.mxu0
        %v1640 = vadd.f32 %v1553, %v1637
        %v1641 = vsub.f32 0.0, %v1640
        %v1642 = vmul.f32 %v1641, 1.442695
        %v1643 = vpow.pop %v1642
        %v1644 = vadd.f32 %v1643, 1.0
        %v1645 = vrcp.pop %v1644
        %v1646 = vmul.f32 1.0, %v1645
        %1648 = vrot.lane.b32.xlu0 %v1637, 64
        %v1649 = vpop.permute.xlu0 %1648
        %v1651 = vmul.f32 %v1646, %v1649
        %1653 = vrot.lane.b32.xlu0 %v1651, 64
        %v1654 = vpop.permute.xlu0 %1653
        %v1656 = vadd.f32 %v1553, %v1654
        %v1657 = vtanh.pop %v1656
        %v1658 = vsub.f32 1.0, %v1646
        %1660 = vrot.lane.b32.xlu0 %v1657, 96
        %v1661 = vpop.permute.xlu0 %1660
        %v1663 = vmul.f32 %v1658, %v1661
        %1664 = vrot.lane.b32.xlu0 %v1472, 32
        %v1665 = vpop.permute.xlu0 %1664
        %v1667 = vmul.f32 %v1646, %v1665
        %v1668 = vadd.f32 %v1663, %v1667
        %1670 = vrot.lane.b32.xlu0 %v1668, 96
        %v1671 = vpop.permute.xlu0 %1670
        %1673 = vst.msk [vmem:[%s989] sm:$0x3] %vm1470, %v1671
        %v1674 = vld [vmem:[%s16] sm:$0xff]
        %v1675 = vld [vmem:[%s16 + $0x8] sm:$0xff]
        %v1676 = vld [vmem:[%s16 + $0x10] sm:$0xff]
        %v1677 = vld [vmem:[%s16 + $0x18] sm:$0xff]
        %v1678 = vld [vmem:[%s17] sm:$0x1]
        %v1680 = vlaneseq
        %v1681 = vshrl.u32 %v1680, 7
        %v1682 = vsub.s32 0, %v1681
        %v1683 = vrot.slane %v1678, %v1682
        %v1685 = vsel %vm995, %v1671, 0
        %1687 = vmatprep.subr.mxu0 0.0
        %1688 = vmatpush1.msra.mxu0 %v1674
        %1689 = vmatprep.subr.mxu0 0.0
        %1690 = vmatpush1.msra.mxu0 %v1675
        %1691 = vmatprep.subr.mxu0 0.0
        %1692 = vmatpush1.msra.mxu0 %v1676
        %1693 = vmatprep.subr.mxu0 0.0
        %1694 = vmatpush1.msra.mxu0 %v1677
        %1695 = vmatprep.subr.mxu0 0.0
        %1696 = vmatpush1.msra.mxu0 0.0
        %1697 = vmatprep.subr.mxu0 0.0
        %1698 = vmatpush1.msra.mxu0 0.0
        %1699 = vmatprep.subr.mxu0 0.0
        %1700 = vmatpush1.msra.mxu0 0.0
        %1701 = vmatprep.subr.mxu0 0.0
        %1702 = vmatpush1.msra.mxu0 0.0
        %1703 = vmatprep.subr.mxu0 0.0
        %1704 = vmatpush1.msra.mxu0 0.0
        %1705 = vmatprep.subr.mxu0 0.0
        %1706 = vmatpush1.msra.mxu0 0.0
        %1707 = vmatprep.subr.mxu0 0.0
        %1708 = vmatpush1.msra.mxu0 0.0
        %1709 = vmatprep.subr.mxu0 0.0
        %1710 = vmatpush1.msra.mxu0 0.0
        %1711 = vmatprep.subr.mxu0 0.0
        %1712 = vmatpush1.msra.mxu0 0.0
        %1713 = vmatprep.subr.mxu0 0.0
        %1714 = vmatpush1.msra.mxu0 0.0
        %1715 = vmatprep.subr.mxu0 0.0
        %1716 = vmatpush1.msra.mxu0 0.0
        %1717 = vmatprep.subr.mxu0 0.0
        %1718 = vmatpush1.msra.mxu0 0.0
        %1719 = vmatprep.subr.mxu0 0.0
        %1720 = vmatpush1.msra.mxu0 0.0
        %1721 = vmatprep.subr.mxu0 0.0
        %1722 = vmatpush1.msra.mxu0 0.0
        %1723 = vmatprep.subr.mxu0 0.0
        %1724 = vmatpush1.msra.mxu0 0.0
        %1725 = vmatprep.subr.mxu0 0.0
        %1726 = vmatpush1.msra.mxu0 0.0
        %1727 = vmatprep.subr.mxu0 0.0
        %1728 = vmatpush1.msra.mxu0 0.0
        %1729 = vmatprep.subr.mxu0 0.0
        %1730 = vmatpush1.msra.mxu0 0.0
        %1731 = vmatprep.subr.mxu0 0.0
        %1732 = vmatpush1.msra.mxu0 0.0
        %1733 = vmatprep.subr.mxu0 0.0
        %1734 = vmatpush1.msra.mxu0 0.0
        %1735 = vmatprep.subr.mxu0 0.0
        %1736 = vmatpush1.msra.mxu0 0.0
        %1737 = vmatprep.subr.mxu0 0.0
        %1738 = vmatpush1.msra.mxu0 0.0
        %1739 = vmatprep.subr.mxu0 0.0
        %1740 = vmatpush1.msra.mxu0 0.0
        %1741 = vmatprep.subr.mxu0 0.0
        %1742 = vmatpush1.msra.mxu0 0.0
        %1743 = vmatprep.subr.mxu0 0.0
        %1744 = vmatpush1.msra.mxu0 0.0
        %1745 = vmatprep.subr.mxu0 0.0
        %1746 = vmatpush1.msra.mxu0 0.0
        %1747 = vmatprep.subr.mxu0 0.0
        %1748 = vmatpush1.msra.mxu0 0.0
        %1749 = vmatprep.subr.mxu0 0.0
        %1750 = vmatpush1.msra.mxu0 0.0
        %1751 = vmatprep.mubr.f32.mxu0 0.0
        %1752 = vmatmul.mubr.f32.gmra.mrb[0].mxu0 %v1685
        %v1753 = vpop.f32.mrb[0].mxu0
        %v1754 = vadd.f32 %v1683, %v1753
        %v1755 = vpop.f32.mrb[0].mxu0
        %1756 = vdwg.mxu0
        %1757 = vst [vmem:[%s874] sm:$0x3] %v1754
        %v1758 = vld [vmem:[#allocation3] sm:$0x3]
        %v1759 = vld [vmem:[#allocation3 + $0x2] sm:$0x3]
        %1760 = vst.msk [vmem:[#allocation30] sm:$0x3] %vm1470, %v1758
        %1761 = vst.msk [vmem:[#allocation30 + $0x2] sm:$0x3] %vm1470, %v1759
        %s1762 = sand.u32 %s470, 1
        %s1763 = scalar_lea.sflag [#allocation6], %s1762
        %s1764 = sand.u32 %s470, 1
        %s1765 = smul.addr %s1764, 2
        %s1766 = scalar_lea.vmem [#allocation27], %s1765
        %s1767 = sand.u32 %s48, 1
        %s1768 = scalar_lea.sflag [#allocation29], %s1767
        %s1769 = sand.u32 %s498, 1
        %s1770 = smul.addr %s1769, 2
        %s1771 = scalar_lea.vmem [#allocation28], %s1770
        // Predicated region
        $region153: #{tpu_custom_call.1} parent=91 // pred_check
          %p1772 = pneg %p480
        $region154: #{tpu_custom_call.1} parent=91 // pred_check_branch
          %1774 = sbr.rel (%p1772) target = $region156
        $region155: #{tpu_custom_call.1} parent=91 // pred_region
          %s1776 = ssub.s32 32, 32
          %1777 = vsyncadd %s1763, %s1776
          %s1778 = sadd.s32 %s52, %s53
          %s1779 = smul.addr %s1778, 32
          %s1780 = scalar_lea.hbm %s18, %s1779
          %s1782 = sshll.u32 %s1766, 4
          %s1783 = int_to_ptr.vmem [resolvable:$true] %s1782
          %1785 = dma.vmem_to_hbm [thread:$0]  %s1783, 32, %s1780, %s1763
        $region156: #{tpu_custom_call.1} parent=91 // pred_fallthru
          _
        // Predicated region
        $region157: #{tpu_custom_call.1} parent=91 // pred_check
          %p1786 = pneg %p508
        $region158: #{tpu_custom_call.1} parent=91 // pred_check_branch
          %1788 = sbr.rel (%p1786) target = $region160
        $region159: #{tpu_custom_call.1} parent=91 // pred_region
          %s1790 = ssub.s32 32, 32
          %1791 = vsyncadd %s1768, %s1790
          %s1792 = sadd.s32 %s52, %s53
          %s1793 = smul.addr %s1792, 32
          %s1794 = scalar_lea.hbm %s19, %s1793
          %s1796 = sshll.u32 %s1771, 4
          %s1797 = int_to_ptr.vmem [resolvable:$true] %s1796
          %1799 = dma.vmem_to_hbm [thread:$0]  %s1797, 32, %s1794, %s1768
        $region160: #{tpu_custom_call.1} parent=91 // pred_fallthru
          _
        // Predicated region
        $region161: #{tpu_custom_call.1} parent=91 // pred_check
          %p1800 = pneg %p534
        $region162: #{tpu_custom_call.1} parent=91 // pred_check_branch
          %1802 = sbr.rel (%p1800) target = $region164
        $region163: #{tpu_custom_call.1} parent=91 // pred_region
          %s1804 = ssub.s32 64, 64
          %1805 = vsyncadd [#allocation29], %s1804
          %s1806 = smul.addr %s52, 32
          %s1807 = scalar_lea.hbm %s20, %s1806
          %s1808 = sshll.u32 [#allocation30], 4
          %s1809 = int_to_ptr.vmem [resolvable:$true] %s1808
          %1814 = dma.vmem_to_hbm [thread:$0]  %s1809, 64, %s1807, [#allocation29], 32, 32, 2
        $region164: #{tpu_custom_call.1} parent=91 // pred_fallthru
          _
        // Predicated region
        $region165: #{tpu_custom_call.1} parent=91 // pred_check
          %p1815 = pneg %p534
        $region166: #{tpu_custom_call.1} parent=91 // pred_check_branch
          %1817 = sbr.rel (%p1815) target = $region168
        $region167: #{tpu_custom_call.1} parent=91 // pred_region
          %1818 = dma.done [#allocation29], 64
        $region168: #{tpu_custom_call.1} parent=91 // pred_fallthru
          _
      $region92: #{tpu_custom_call.1} parent=5 // pred_fallthru
        _
      %p1819 = scmp.le.s32.totalorder 2, %s43
      // Predicated region
      $region169: #{tpu_custom_call.1} parent=5 // pred_check
        %p1820 = pneg %p1819
      $region170: #{tpu_custom_call.1} parent=5 // pred_check_branch
        %1822 = sbr.rel (%p1820) target = $region172
      $region171: #{tpu_custom_call.1} parent=5 // pred_region
        %s1823 = ssub.s32 %s43, 2
        // Predicated region
        $region173: #{tpu_custom_call.1} parent=171 // pred_check
          %p1824 = pneg %p486
        $region174: #{tpu_custom_call.1} parent=171 // pred_check_branch
          %1826 = sbr.rel (%p1824) target = $region176
        $region175: #{tpu_custom_call.1} parent=171 // pred_region
          %s1827 = sand.u32 %s471, 1
          %s1828 = scalar_lea.sflag [#allocation6], %s1827
          %s1829 = sand.u32 %s471, 1
          %s1830 = smul.addr %s1829, 2
          %s1831 = scalar_lea.vmem [#allocation27], %s1830
          %1832 = dma.done %s1828, 32
        $region176: #{tpu_custom_call.1} parent=171 // pred_fallthru
          _
        // Predicated region
        $region177: #{tpu_custom_call.1} parent=171 // pred_check
          %p1833 = pneg %p514
        $region178: #{tpu_custom_call.1} parent=171 // pred_check_branch
          %1835 = sbr.rel (%p1833) target = $region180
        $region179: #{tpu_custom_call.1} parent=171 // pred_region
          %s1836 = sand.u32 %s49, 1
          %s1837 = scalar_lea.sflag [#allocation29], %s1836
          %s1838 = sand.u32 %s499, 1
          %s1839 = smul.addr %s1838, 2
          %s1840 = scalar_lea.vmem [#allocation28], %s1839
          %1841 = dma.done %s1837, 32
        $region180: #{tpu_custom_call.1} parent=171 // pred_fallthru
          _
      $region172: #{tpu_custom_call.1} parent=5 // pred_fallthru
        _
    $region6: #{tpu_custom_call.1} parent=1 // loop_footer
      %s47 = sadd.s32 1, %s43
    $region7: #{tpu_custom_call.1} parent=1 // loop_footer_branch
      %42 = sbr.rel target = $region3
    $region8: #{tpu_custom_call.1} parent=1 // loop_exit
      _
    %1842 = vsyncpa [#allocation5], 1
    %s1843 = scalar_lea.sflag [#allocation5], 1
    %1844 = vsyncpa %s1843, 1
    %1845 = vsyncpa [#allocation8], 1
    %1846 = vsyncpa [#allocation11], 1
    %1847 = vsyncpa [#allocation14], 1
    %1848 = vsyncpa [#allocation17], 1
    %1849 = vsyncpa [#allocation20], 1
    %1850 = vsyncpa [#allocation23], 1
    %1851 = vsyncpa [#allocation26], 1
    %1852 = vsyncpa [#allocation6], 1
    %s1853 = scalar_lea.sflag [#allocation6], 1
    %1854 = vsyncpa %s1853, 1
    %1855 = vsyncpa [#allocation29], 1
    %s1856 = scalar_lea.sflag [#allocation29], 1
    %1857 = vsyncpa %s1856, 1

</llo_original>
